<compile_context>
chip_gen: v5e
topology: v5e:2x2
jax: 0.10.0
libtpu: 0.0.40
codegen_flags: <defaults>
</compile_context>

<pallas_src>
import functools

import numpy as np
import jax
import jax.numpy as jnp
from jax.experimental import pallas as pl
from jax.experimental.pallas import tpu as pltpu


# 3x3 taps (dh, dw); order matches kernel-weight index t = (dh + 1) * 3 + (dw + 1).
_TAPS = tuple((dh, dw) for dh in (-1, 0, 1) for dw in (-1, 0, 1))


def _round_up(n, m):
    return (n + m - 1) // m * m


def _fold_factor(B, C):
    """How many batch images to fold into sublanes (8 f32 sublanes per vreg)."""
    F = max(1, 8 // C)
    while F > 1 and B % F:
        F -= 1
    return F


def _conv_constants(H, W, s_pad):
    """Lane-shift offsets + boundary-validity masks for a 3x3 'same' conv on a
    row-major flattened (H, W) grid, zero-padded to s_pad lanes.

    The masks zero every position whose tap neighbour is out of bounds, which
    also zeroes anything a circular lane roll wraps in (image edge / lane pad),
    so pltpu.roll is bit-identical to a zero-filled shift here."""
    S = H * W
    hh, ww = np.meshgrid(np.arange(H), np.arange(W), indexing="ij")
    shifts, masks = [], []
    for dh, dw in _TAPS:
        shifts.append(dh * W + dw)
        valid = ((hh + dh >= 0) & (hh + dh < H) &
                 (ww + dw >= 0) & (ww + dw < W))
        m = np.zeros(s_pad, np.float32)
        m[:S] = valid.reshape(S).astype(np.float32)
        masks.append(m)
    return tuple(shifts), jnp.asarray(np.stack(masks))          # (9, s_pad)


# ----------------------------------------------------------------------------
# wrapper-side weight preparation (fold F images -> block-diagonal weights)
# ----------------------------------------------------------------------------
def _stack_taps(w9, F):
    """(9, Co, Ci) tap weights -> (F*Co, 9*F*Ci) stacked weight so the whole
    3x3 conv (all taps, all folded images) is one matmul."""
    Co, Ci = w9.shape[1:]
    eye = jnp.eye(F, dtype=w9.dtype)
    bd = jnp.einsum("fg,toi->tfogi", eye, w9).reshape(9, F * Co, F * Ci)
    return jnp.transpose(bd, (1, 0, 2)).reshape(F * Co, 9 * F * Ci)


def _blockdiag(w, F):
    """(Co, Ci) -> (F*Co, F*Ci) block-diagonal (one block per folded image)."""
    Co, Ci = w.shape
    eye = jnp.eye(F, dtype=w.dtype)
    return jnp.einsum("fg,oi->fogi", eye, w).reshape(F * Co, F * Ci)


# ----------------------------------------------------------------------------
# in-kernel helpers
# ----------------------------------------------------------------------------
def _conv3x3(x, w_ref, b_ref, masks, shifts, leaky):
    """3x3 'same' conv on a (Cf, S) tile as ONE MXU matmul.

    x: (Cf, S) value, w_ref: (Cf, 9*Cf) VMEM ref (tap-stacked, block-diag over
    folded images), b_ref: (Cf, 1) VMEM ref, masks: (9, S) value,
    shifts: tuple of 9 python ints (lane offsets)."""
    Cf, S = x.shape
    taps = []
    for t, s in enumerate(shifts):
        # y[:, p] = x[:, p + s] (circular); masks zero every wrapped position.
        xt = x if s == 0 else pltpu.roll(x, shift=(-s) % S, axis=1)
        taps.append(xt * masks[t:t + 1])
    stack = jnp.concatenate(taps, axis=0)                        # (9*Cf, S)
    acc = jnp.dot(w_ref[...], stack, preferred_element_type=jnp.float32)
    acc = acc + b_ref[...]                                       # (Cf, 1) bias
    if leaky:
        acc = jnp.where(acc >= 0, acc, 0.2 * acc)
    return acc


# ----------------------------------------------------------------------------
# kernel 1: fused frequency branch (amp convs + spectrum rescale)
# ----------------------------------------------------------------------------
def _freq_kernel(re_ref, im_ref, w1_ref, b1_ref, w2_ref, b2_ref, mask_ref,
                 reo_ref, imo_ref, *, shifts):
    re = re_ref[0]                                   # (Cf, Sfp)
    im = im_ref[0]
    masks = mask_ref[...]                            # (9, Sfp)
    amp = jnp.sqrt(re * re + im * im)                # |fft|
    a = _conv3x3(amp, w1_ref, b1_ref, masks, shifts, leaky=True)
    a = _conv3x3(a, w2_ref, b2_ref, masks, shifts, leaky=False)
    # amp_new * exp(i*phase) == (amp_new / amp) * fft — no angle/cos/sin needed.
    # TODO(synk): ABTB module is not defined in the reference source; it is
    # treated as identity on phase (phase preserved exactly by the rescale).
    # pl.reciprocal keeps the divide off the VALU; approx=True is the faster
    # EUP-only variant but approx error multiplies into re/im, so keep exact.
    ratio = a * pl.reciprocal(jnp.maximum(amp, 1e-12), approx=False)
    reo_ref[0] = (re * ratio).astype(reo_ref.dtype)
    imo_ref[0] = (im * ratio).astype(imo_ref.dtype)


def freq_branch(re, im, w1, b1, w2, b2, masks, *, shifts):
    G, Cf, Sp = re.shape
    img = pl.BlockSpec((1, Cf, Sp), lambda g: (g, 0, 0))

    def rep(a):                                       # replicated (full-array) spec
        return pl.BlockSpec(a.shape, lambda g, _nd=a.ndim: (0,) * _nd)

    return pl.pallas_call(
        functools.partial(_freq_kernel, shifts=shifts),
        out_shape=(jax.ShapeDtypeStruct((G, Cf, Sp), jnp.float32),
                   jax.ShapeDtypeStruct((G, Cf, Sp), jnp.float32)),
        grid=(G,),
        in_specs=[img, img, rep(w1), rep(b1), rep(w2), rep(b2), rep(masks)],
        out_specs=(img, img),
        compiler_params=pltpu.CompilerParams(
            dimension_semantics=("parallel",)),
    )(re, im, w1, b1, w2, b2, masks)


# ----------------------------------------------------------------------------
# kernel 2: fused spatial branch + residual + concat + 1x1 conv
# ----------------------------------------------------------------------------
def _spatial_fuse_kernel(x_ref, f_ref, w1_ref, b1_ref, w2_ref, b2_ref,
                         wa_ref, wb_ref, b11_ref, mask_ref, out_ref, *, shifts):
    x = x_ref[0]                                     # (Cf, Sp), also the residual
    f = f_ref[0]                                     # (Cf, Sp) frequency output
    masks = mask_ref[...]
    h = _conv3x3(x, w1_ref, b1_ref, masks, shifts, leaky=True)
    h = _conv3x3(h, w2_ref, b2_ref, masks, shifts, leaky=False)
    xs = h + x                                       # residual add
    # concat([xs, f], channel) . W11  ==  W11a @ xs + W11b @ f
    out = (jnp.dot(wa_ref[...], xs, preferred_element_type=jnp.float32)
           + jnp.dot(wb_ref[...], f, preferred_element_type=jnp.float32)
           + b11_ref[...])
    out_ref[0] = out.astype(out_ref.dtype)


def spatial_fuse(x, fout, w1, b1, w2, b2, w11a, w11b, b11, masks, *, shifts):
    G, Cf, Sp = x.shape
    img = pl.BlockSpec((1, Cf, Sp), lambda g: (g, 0, 0))

    def rep(a):
        return pl.BlockSpec(a.shape, lambda g, _nd=a.ndim: (0,) * _nd)

    return pl.pallas_call(
        functools.partial(_spatial_fuse_kernel, shifts=shifts),
        out_shape=jax.ShapeDtypeStruct((G, Cf, Sp), jnp.float32),
        grid=(G,),
        in_specs=[img, img,
                  rep(w1), rep(b1), rep(w2), rep(b2),
                  rep(w11a), rep(w11b), rep(b11), rep(masks)],
        out_specs=img,
        compiler_params=pltpu.CompilerParams(
            dimension_semantics=("parallel",)),
    )(x, fout, w1, b1, w2, b2, w11a, w11b, b11, masks)


# ----------------------------------------------------------------------------
# MFFE forward
# ----------------------------------------------------------------------------
def mffe_forward(x_nchw, params):
    B, C, H, W = x_nchw.shape
    S = H * W
    Wf = W // 2 + 1
    Sf = H * Wf

    F = _fold_factor(B, C)          # images folded into sublanes
    G = B // F                      # grid steps (parallel / megacore)
    Cf = F * C
    Sp = _round_up(S, 128)          # lane-dense spatial width
    Sfp = _round_up(Sf, 128)        # lane-dense frequency width

    # fold / stack weights once (block-diagonal over the F folded images)
    fw1 = _stack_taps(params["fw1"], F); fb1 = jnp.tile(params["fb1"], (F, 1))
    fw2 = _stack_taps(params["fw2"], F); fb2 = jnp.tile(params["fb2"], (F, 1))
    sw1 = _stack_taps(params["sw1"], F); sb1 = jnp.tile(params["sb1"], (F, 1))
    sw2 = _stack_taps(params["sw2"], F); sb2 = jnp.tile(params["sb2"], (F, 1))
    w11a = _blockdiag(params["w11a"], F)
    w11b = _blockdiag(params["w11b"], F)
    b11 = jnp.tile(params["b11"], (F, 1))

    def fold(a, s_pad):
        # (B, C, s) -> zero-pad lanes -> (G, F*C, s_pad)
        a = jnp.pad(a, ((0, 0), (0, 0), (0, s_pad - a.shape[-1])))
        return a.reshape(G, Cf, s_pad)

    def unfold(a, s):
        return a[..., :s].reshape(B, C, s)

    # frequency branch -------------------------------------------------------
    # TODO(synk): rfft2 / irfft2 stay in plain JAX (no Pallas FFT primitive).
    fft = jnp.fft.rfft2(x_nchw, axes=(2, 3), norm="ortho")       # (B,C,H,Wf)
    re = fold(jnp.real(fft).astype(jnp.float32).reshape(B, C, Sf), Sfp)
    im = fold(jnp.imag(fft).astype(jnp.float32).reshape(B, C, Sf), Sfp)
    fshifts, fmasks = _conv_constants(H, Wf, Sfp)
    reo, imo = freq_branch(re, im, fw1, fb1, fw2, fb2, fmasks, shifts=fshifts)
    spec = jax.lax.complex(unfold(reo, Sf), unfold(imo, Sf)).reshape(B, C, H, Wf)
    # s=(H, W) passed explicitly (identical to the PyTorch default for even W).
    fout = jnp.fft.irfft2(spec, s=(H, W), axes=(2, 3), norm="ortho")
    fout = fout.astype(jnp.float32).reshape(B, C, S)

    # spatial branch + residual + concat + 1x1 conv (single fused kernel) ----
    sshifts, smasks = _conv_constants(H, W, Sp)
    out = spatial_fuse(fold(x_nchw.reshape(B, C, S), Sp), fold(fout, Sp),
                       sw1, sb1, sw2, sb2, w11a, w11b, b11, smasks,
                       shifts=sshifts)
    return unfold(out, S).reshape(B, C, H, W)


# ----------------------------------------------------------------------------
# pure-JAX reference (faithful to the PyTorch forward, for correctness check)
# ----------------------------------------------------------------------------
def mffe_reference(x, params):
    B, C, H, W = x.shape
    hi = jax.lax.Precision.HIGHEST

    def conv3(v, w9, b):
        # w9: (9, Cout, Cin) -> OIHW (Cout, Cin, 3, 3)
        w = jnp.transpose(w9.reshape(3, 3, C, C), (2, 3, 0, 1))
        y = jax.lax.conv_general_dilated(
            v, w, (1, 1), "SAME",
            dimension_numbers=("NCHW", "OIHW", "NCHW"), precision=hi)
        return y + b.reshape(1, C, 1, 1)

    def leaky(v):
        return jnp.where(v >= 0, v, 0.2 * v)

    identity = x
    fft = jnp.fft.rfft2(x, axes=(2, 3), norm="ortho")
    amp = jnp.abs(fft).astype(jnp.float32)
    phase = jnp.angle(fft).astype(jnp.float32)
    amp = conv3(amp, params["fw1"], params["fb1"])
    amp = leaky(amp)
    amp = conv3(amp, params["fw2"], params["fb2"])
    fout = jnp.fft.irfft2(amp * jnp.cos(phase) + 1j * (amp * jnp.sin(phase)),
                          s=(H, W), axes=(2, 3), norm="ortho")
    fout = fout.astype(jnp.float32)
    xs = conv3(x, params["sw1"], params["sb1"])
    xs = leaky(xs)
    xs = conv3(xs, params["sw2"], params["sb2"])
    xs = xs + identity
    w11 = jnp.concatenate([params["w11a"], params["w11b"]], axis=1)   # (C, 2C)
    cat = jnp.concatenate([xs, fout], axis=1)                         # (B,2C,H,W)
    out = jnp.einsum("ok,bkhw->bohw", w11, cat, precision=hi) \
        + params["b11"].reshape(1, C, 1, 1)
    return out


# ----------------------------------------------------------------------------
# deterministic parameter init (shapes from nn.Conv2d defs in MFFE.__init__)
# 3x3 weights stored as (9, Cout, Cin) with tap index t = kh*3 + kw.
# ----------------------------------------------------------------------------
def init_params(key, C):
    ks = jax.random.split(key, 11)

    def w9(k):
        return (0.1 * jax.random.normal(k, (9, C, C))).astype(jnp.float32)

    def bias(k):
        return (0.1 * jax.random.normal(k, (C, 1))).astype(jnp.float32)

    return {
        "sw1": w9(ks[0]), "sb1": bias(ks[1]),
        "sw2": w9(ks[2]), "sb2": bias(ks[3]),
        "fw1": w9(ks[4]), "fb1": bias(ks[5]),
        "fw2": w9(ks[6]), "fb2": bias(ks[7]),
        "w11a": (0.1 * jax.random.normal(ks[8], (C, C))).astype(jnp.float32),
        "w11b": (0.1 * jax.random.normal(ks[9], (C, C))).astype(jnp.float32),
        "b11": bias(ks[10]),
    }


if __name__ == "__main__":
    B, C, H, W = 2, 4, 16, 16
    key = jax.random.PRNGKey(0)
    k_x, k_p = jax.random.split(key)
    x = jax.random.normal(k_x, (B, C, H, W), dtype=jnp.float32)
    params = init_params(k_p, C)

    fwd = jax.jit(mffe_forward)
    out = jax.block_until_ready(fwd(x, params))
    ref = jax.block_until_ready(mffe_reference(x, params))

    assert out.shape == (B, C, H, W), out.shape
    err = float(jnp.max(jnp.abs(out - ref)))
    assert jnp.allclose(out, ref, atol=1e-3, rtol=1e-3), f"max abs err {err}"
    print("KERNEL_OK")
</pallas_src>

<mosaic_0001>
module attributes {stable_mosaic.version = 11 : i64} {
  func.func @_freq_kernel(%arg0: i32, %arg1: memref<1x8x256xf32, #tpu.memory_space<vmem>>, %arg2: memref<1x8x256xf32, #tpu.memory_space<vmem>>, %arg3: memref<8x72xf32, #tpu.memory_space<vmem>>, %arg4: memref<8x1xf32, #tpu.memory_space<vmem>>, %arg5: memref<8x72xf32, #tpu.memory_space<vmem>>, %arg6: memref<8x1xf32, #tpu.memory_space<vmem>>, %arg7: memref<9x256xf32, #tpu.memory_space<vmem>>, %arg8: memref<1x8x256xf32, #tpu.memory_space<vmem>>, %arg9: memref<1x8x256xf32, #tpu.memory_space<vmem>>) attributes {dimension_semantics = [#tpu.dimension_semantics<parallel>], iteration_bounds = array<i64: 1>, scalar_prefetch = 0 : i64, scratch_operands = 0 : i64, tpu.core_type = #tpu.core_type<tc>, window_params = [{transform_indices = @transform_0, window_bounds = array<i64: 1, 8, 256>}, {transform_indices = @transform_1, window_bounds = array<i64: 1, 8, 256>}, {pipeline_mode = #tpu.pipeline_mode<synchronous>, transform_indices = @transform_2, window_bounds = array<i64: 8, 72>}, {pipeline_mode = #tpu.pipeline_mode<synchronous>, transform_indices = @transform_3, window_bounds = array<i64: 8, 1>}, {pipeline_mode = #tpu.pipeline_mode<synchronous>, transform_indices = @transform_4, window_bounds = array<i64: 8, 72>}, {pipeline_mode = #tpu.pipeline_mode<synchronous>, transform_indices = @transform_5, window_bounds = array<i64: 8, 1>}, {pipeline_mode = #tpu.pipeline_mode<synchronous>, transform_indices = @transform_6, window_bounds = array<i64: 9, 256>}, {transform_indices = @transform_7, window_bounds = array<i64: 1, 8, 256>}, {transform_indices = @transform_8, window_bounds = array<i64: 1, 8, 256>}]} {
    %c0 = arith.constant 0 : index
    %c0_0 = arith.constant 0 : index
    %c0_1 = arith.constant 0 : index
    %0 = vector.load %arg1[%c0, %c0_0, %c0_1] : memref<1x8x256xf32, #tpu.memory_space<vmem>>, vector<1x8x256xf32>
    %1 = vector.shape_cast %0 : vector<1x8x256xf32> to vector<8x256xf32>
    %c0_2 = arith.constant 0 : index
    %c0_3 = arith.constant 0 : index
    %c0_4 = arith.constant 0 : index
    %2 = vector.load %arg2[%c0_2, %c0_3, %c0_4] : memref<1x8x256xf32, #tpu.memory_space<vmem>>, vector<1x8x256xf32>
    %3 = vector.shape_cast %2 : vector<1x8x256xf32> to vector<8x256xf32>
    %c0_5 = arith.constant 0 : index
    %c0_6 = arith.constant 0 : index
    %4 = vector.load %arg7[%c0_5, %c0_6] : memref<9x256xf32, #tpu.memory_space<vmem>>, vector<9x256xf32>
    %5 = arith.mulf %1, %1 : vector<8x256xf32>
    %6 = arith.mulf %3, %3 : vector<8x256xf32>
    %7 = arith.addf %5, %6 : vector<8x256xf32>
    %8 = math.sqrt %7 : vector<8x256xf32>
    %c10_i32 = arith.constant 10 : i32
    %9 = tpu.dynamic_rotate %8 by %c10_i32 dim 1 : vector<8x256xf32>, i32 -> vector<8x256xf32>
    %10 = vector.extract_strided_slice %4 {offsets = [0, 0], sizes = [1, 256], strides = [1, 1]} : vector<9x256xf32> to vector<1x256xf32>
    %11 = vector.broadcast %10 : vector<1x256xf32> to vector<8x256xf32>
    %12 = arith.mulf %9, %11 : vector<8x256xf32>
    %c9_i32 = arith.constant 9 : i32
    %13 = tpu.dynamic_rotate %8 by %c9_i32 dim 1 : vector<8x256xf32>, i32 -> vector<8x256xf32>
    %14 = vector.extract_strided_slice %4 {offsets = [1, 0], sizes = [1, 256], strides = [1, 1]} : vector<9x256xf32> to vector<1x256xf32>
    %15 = vector.broadcast %14 : vector<1x256xf32> to vector<8x256xf32>
    %16 = arith.mulf %13, %15 : vector<8x256xf32>
    %c8_i32 = arith.constant 8 : i32
    %17 = tpu.dynamic_rotate %8 by %c8_i32 dim 1 : vector<8x256xf32>, i32 -> vector<8x256xf32>
    %18 = vector.extract_strided_slice %4 {offsets = [2, 0], sizes = [1, 256], strides = [1, 1]} : vector<9x256xf32> to vector<1x256xf32>
    %19 = vector.broadcast %18 : vector<1x256xf32> to vector<8x256xf32>
    %20 = arith.mulf %17, %19 : vector<8x256xf32>
    %c1_i32 = arith.constant 1 : i32
    %21 = tpu.dynamic_rotate %8 by %c1_i32 dim 1 : vector<8x256xf32>, i32 -> vector<8x256xf32>
    %22 = vector.extract_strided_slice %4 {offsets = [3, 0], sizes = [1, 256], strides = [1, 1]} : vector<9x256xf32> to vector<1x256xf32>
    %23 = vector.broadcast %22 : vector<1x256xf32> to vector<8x256xf32>
    %24 = arith.mulf %21, %23 : vector<8x256xf32>
    %25 = vector.extract_strided_slice %4 {offsets = [4, 0], sizes = [1, 256], strides = [1, 1]} : vector<9x256xf32> to vector<1x256xf32>
    %26 = vector.broadcast %25 : vector<1x256xf32> to vector<8x256xf32>
    %27 = arith.mulf %8, %26 : vector<8x256xf32>
    %c255_i32 = arith.constant 255 : i32
    %28 = tpu.dynamic_rotate %8 by %c255_i32 dim 1 : vector<8x256xf32>, i32 -> vector<8x256xf32>
    %29 = vector.extract_strided_slice %4 {offsets = [5, 0], sizes = [1, 256], strides = [1, 1]} : vector<9x256xf32> to vector<1x256xf32>
    %30 = vector.broadcast %29 : vector<1x256xf32> to vector<8x256xf32>
    %31 = arith.mulf %28, %30 : vector<8x256xf32>
    %c248_i32 = arith.constant 248 : i32
    %32 = tpu.dynamic_rotate %8 by %c248_i32 dim 1 : vector<8x256xf32>, i32 -> vector<8x256xf32>
    %33 = vector.extract_strided_slice %4 {offsets = [6, 0], sizes = [1, 256], strides = [1, 1]} : vector<9x256xf32> to vector<1x256xf32>
    %34 = vector.broadcast %33 : vector<1x256xf32> to vector<8x256xf32>
    %35 = arith.mulf %32, %34 : vector<8x256xf32>
    %c247_i32 = arith.constant 247 : i32
    %36 = tpu.dynamic_rotate %8 by %c247_i32 dim 1 : vector<8x256xf32>, i32 -> vector<8x256xf32>
    %37 = vector.extract_strided_slice %4 {offsets = [7, 0], sizes = [1, 256], strides = [1, 1]} : vector<9x256xf32> to vector<1x256xf32>
    %38 = vector.broadcast %37 : vector<1x256xf32> to vector<8x256xf32>
    %39 = arith.mulf %36, %38 : vector<8x256xf32>
    %c246_i32 = arith.constant 246 : i32
    %40 = tpu.dynamic_rotate %8 by %c246_i32 dim 1 : vector<8x256xf32>, i32 -> vector<8x256xf32>
    %41 = vector.extract_strided_slice %4 {offsets = [8, 0], sizes = [1, 256], strides = [1, 1]} : vector<9x256xf32> to vector<1x256xf32>
    %42 = vector.broadcast %41 : vector<1x256xf32> to vector<8x256xf32>
    %43 = arith.mulf %40, %42 : vector<8x256xf32>
    %44 = tpu.concatenate %12, %16, %20, %24, %27, %31, %35, %39, %43 in 0 : vector<8x256xf32>, vector<8x256xf32>, vector<8x256xf32>, vector<8x256xf32>, vector<8x256xf32>, vector<8x256xf32>, vector<8x256xf32>, vector<8x256xf32>, vector<8x256xf32> -> vector<72x256xf32>
    %c0_7 = arith.constant 0 : index
    %c0_8 = arith.constant 0 : index
    %45 = vector.load %arg3[%c0_7, %c0_8] : memref<8x72xf32, #tpu.memory_space<vmem>>, vector<8x72xf32>
    %cst = arith.constant dense<0.000000e+00> : vector<8x256xf32>
    %46 = tpu.matmul %45, %44, %cst {dimension_numbers = #tpu.dot_dimension_numbers<[1], [0], [0], [1], [0, 0, 1, 1], [], []>} : vector<8x72xf32>, vector<72x256xf32>, vector<8x256xf32> -> vector<8x256xf32>
    %c0_9 = arith.constant 0 : index
    %c0_10 = arith.constant 0 : index
    %47 = vector.load %arg4[%c0_9, %c0_10] : memref<8x1xf32, #tpu.memory_space<vmem>>, vector<8x1xf32>
    %48 = vector.broadcast %47 : vector<8x1xf32> to vector<8x256xf32>
    %49 = arith.addf %46, %48 : vector<8x256xf32>
    %cst_11 = arith.constant 0.000000e+00 : f32
    %50 = vector.broadcast %cst_11 : f32 to vector<8x256xf32>
    %51 = arith.cmpf oge, %49, %50 : vector<8x256xf32>
    %cst_12 = arith.constant 2.000000e-01 : f32
    %52 = vector.broadcast %cst_12 : f32 to vector<8x256xf32>
    %53 = arith.mulf %52, %49 : vector<8x256xf32>
    %54 = arith.select %51, %49, %53 : vector<8x256xi1>, vector<8x256xf32>
    %c10_i32_13 = arith.constant 10 : i32
    %55 = tpu.dynamic_rotate %54 by %c10_i32_13 dim 1 : vector<8x256xf32>, i32 -> vector<8x256xf32>
    %56 = vector.extract_strided_slice %4 {offsets = [0, 0], sizes = [1, 256], strides = [1, 1]} : vector<9x256xf32> to vector<1x256xf32>
    %57 = vector.broadcast %56 : vector<1x256xf32> to vector<8x256xf32>
    %58 = arith.mulf %55, %57 : vector<8x256xf32>
    %c9_i32_14 = arith.constant 9 : i32
    %59 = tpu.dynamic_rotate %54 by %c9_i32_14 dim 1 : vector<8x256xf32>, i32 -> vector<8x256xf32>
    %60 = vector.extract_strided_slice %4 {offsets = [1, 0], sizes = [1, 256], strides = [1, 1]} : vector<9x256xf32> to vector<1x256xf32>
    %61 = vector.broadcast %60 : vector<1x256xf32> to vector<8x256xf32>
    %62 = arith.mulf %59, %61 : vector<8x256xf32>
    %c8_i32_15 = arith.constant 8 : i32
    %63 = tpu.dynamic_rotate %54 by %c8_i32_15 dim 1 : vector<8x256xf32>, i32 -> vector<8x256xf32>
    %64 = vector.extract_strided_slice %4 {offsets = [2, 0], sizes = [1, 256], strides = [1, 1]} : vector<9x256xf32> to vector<1x256xf32>
    %65 = vector.broadcast %64 : vector<1x256xf32> to vector<8x256xf32>
    %66 = arith.mulf %63, %65 : vector<8x256xf32>
    %c1_i32_16 = arith.constant 1 : i32
    %67 = tpu.dynamic_rotate %54 by %c1_i32_16 dim 1 : vector<8x256xf32>, i32 -> vector<8x256xf32>
    %68 = vector.extract_strided_slice %4 {offsets = [3, 0], sizes = [1, 256], strides = [1, 1]} : vector<9x256xf32> to vector<1x256xf32>
    %69 = vector.broadcast %68 : vector<1x256xf32> to vector<8x256xf32>
    %70 = arith.mulf %67, %69 : vector<8x256xf32>
    %71 = vector.extract_strided_slice %4 {offsets = [4, 0], sizes = [1, 256], strides = [1, 1]} : vector<9x256xf32> to vector<1x256xf32>
    %72 = vector.broadcast %71 : vector<1x256xf32> to vector<8x256xf32>
    %73 = arith.mulf %54, %72 : vector<8x256xf32>
    %c255_i32_17 = arith.constant 255 : i32
    %74 = tpu.dynamic_rotate %54 by %c255_i32_17 dim 1 : vector<8x256xf32>, i32 -> vector<8x256xf32>
    %75 = vector.extract_strided_slice %4 {offsets = [5, 0], sizes = [1, 256], strides = [1, 1]} : vector<9x256xf32> to vector<1x256xf32>
    %76 = vector.broadcast %75 : vector<1x256xf32> to vector<8x256xf32>
    %77 = arith.mulf %74, %76 : vector<8x256xf32>
    %c248_i32_18 = arith.constant 248 : i32
    %78 = tpu.dynamic_rotate %54 by %c248_i32_18 dim 1 : vector<8x256xf32>, i32 -> vector<8x256xf32>
    %79 = vector.extract_strided_slice %4 {offsets = [6, 0], sizes = [1, 256], strides = [1, 1]} : vector<9x256xf32> to vector<1x256xf32>
    %80 = vector.broadcast %79 : vector<1x256xf32> to vector<8x256xf32>
    %81 = arith.mulf %78, %80 : vector<8x256xf32>
    %c247_i32_19 = arith.constant 247 : i32
    %82 = tpu.dynamic_rotate %54 by %c247_i32_19 dim 1 : vector<8x256xf32>, i32 -> vector<8x256xf32>
    %83 = vector.extract_strided_slice %4 {offsets = [7, 0], sizes = [1, 256], strides = [1, 1]} : vector<9x256xf32> to vector<1x256xf32>
    %84 = vector.broadcast %83 : vector<1x256xf32> to vector<8x256xf32>
    %85 = arith.mulf %82, %84 : vector<8x256xf32>
    %c246_i32_20 = arith.constant 246 : i32
    %86 = tpu.dynamic_rotate %54 by %c246_i32_20 dim 1 : vector<8x256xf32>, i32 -> vector<8x256xf32>
    %87 = vector.extract_strided_slice %4 {offsets = [8, 0], sizes = [1, 256], strides = [1, 1]} : vector<9x256xf32> to vector<1x256xf32>
    %88 = vector.broadcast %87 : vector<1x256xf32> to vector<8x256xf32>
    %89 = arith.mulf %86, %88 : vector<8x256xf32>
    %90 = tpu.concatenate %58, %62, %66, %70, %73, %77, %81, %85, %89 in 0 : vector<8x256xf32>, vector<8x256xf32>, vector<8x256xf32>, vector<8x256xf32>, vector<8x256xf32>, vector<8x256xf32>, vector<8x256xf32>, vector<8x256xf32>, vector<8x256xf32> -> vector<72x256xf32>
    %c0_21 = arith.constant 0 : index
    %c0_22 = arith.constant 0 : index
    %91 = vector.load %arg5[%c0_21, %c0_22] : memref<8x72xf32, #tpu.memory_space<vmem>>, vector<8x72xf32>
    %cst_23 = arith.constant dense<0.000000e+00> : vector<8x256xf32>
    %92 = tpu.matmul %91, %90, %cst_23 {dimension_numbers = #tpu.dot_dimension_numbers<[1], [0], [0], [1], [0, 0, 1, 1], [], []>} : vector<8x72xf32>, vector<72x256xf32>, vector<8x256xf32> -> vector<8x256xf32>
    %c0_24 = arith.constant 0 : index
    %c0_25 = arith.constant 0 : index
    %93 = vector.load %arg6[%c0_24, %c0_25] : memref<8x1xf32, #tpu.memory_space<vmem>>, vector<8x1xf32>
    %94 = vector.broadcast %93 : vector<8x1xf32> to vector<8x256xf32>
    %95 = arith.addf %92, %94 : vector<8x256xf32>
    %cst_26 = arith.constant 9.99999996E-13 : f32
    %96 = vector.broadcast %cst_26 : f32 to vector<8x256xf32>
    %97 = arith.maximumf %8, %96 : vector<8x256xf32>
    %98 = tpu.reciprocal %97 : vector<8x256xf32> -> vector<8x256xf32>
    %99 = arith.mulf %95, %98 : vector<8x256xf32>
    %100 = arith.mulf %1, %99 : vector<8x256xf32>
    %c0_27 = arith.constant 0 : index
    %c0_28 = arith.constant 0 : index
    %c0_29 = arith.constant 0 : index
    %101 = vector.load %arg8[%c0_27, %c0_28, %c0_29] : memref<1x8x256xf32, #tpu.memory_space<vmem>>, vector<1x8x256xf32>
    %102 = vector.shape_cast %101 : vector<1x8x256xf32> to vector<8x256xf32>
    %103 = vector.shape_cast %100 : vector<8x256xf32> to vector<1x8x256xf32>
    tpu.vector_store %arg8[%c0_27, %c0_28, %c0_29], %103 {strides = array<i32>} : memref<1x8x256xf32, #tpu.memory_space<vmem>>, vector<1x8x256xf32>,
    %104 = arith.mulf %3, %99 : vector<8x256xf32>
    %c0_30 = arith.constant 0 : index
    %c0_31 = arith.constant 0 : index
    %c0_32 = arith.constant 0 : index
    %105 = vector.load %arg9[%c0_30, %c0_31, %c0_32] : memref<1x8x256xf32, #tpu.memory_space<vmem>>, vector<1x8x256xf32>
    %106 = vector.shape_cast %105 : vector<1x8x256xf32> to vector<8x256xf32>
    %107 = vector.shape_cast %104 : vector<8x256xf32> to vector<1x8x256xf32>
    tpu.vector_store %arg9[%c0_30, %c0_31, %c0_32], %107 {strides = array<i32>} : memref<1x8x256xf32, #tpu.memory_space<vmem>>, vector<1x8x256xf32>,
    return
  }
  func.func @transform_0(%arg0: i32) -> (i32, i32, i32) {
    %c0_i32 = arith.constant 0 : i32
    %c0_i32_0 = arith.constant 0 : i32
    %c0_i32_1 = arith.constant 0 : i32
    return %arg0, %c0_i32, %c0_i32_0 : i32, i32, i32
  }
  func.func @transform_1(%arg0: i32) -> (i32, i32, i32) {
    %c0_i32 = arith.constant 0 : i32
    %c0_i32_0 = arith.constant 0 : i32
    %c0_i32_1 = arith.constant 0 : i32
    return %arg0, %c0_i32, %c0_i32_0 : i32, i32, i32
  }
  func.func @transform_2(%arg0: i32) -> (i32, i32) {
    %c0_i32 = arith.constant 0 : i32
    %c0_i32_0 = arith.constant 0 : i32
    %c0_i32_1 = arith.constant 0 : i32
    return %c0_i32, %c0_i32_0 : i32, i32
  }
  func.func @transform_3(%arg0: i32) -> (i32, i32) {
    %c0_i32 = arith.constant 0 : i32
    %c0_i32_0 = arith.constant 0 : i32
    %c0_i32_1 = arith.constant 0 : i32
    return %c0_i32, %c0_i32_0 : i32, i32
  }
  func.func @transform_4(%arg0: i32) -> (i32, i32) {
    %c0_i32 = arith.constant 0 : i32
    %c0_i32_0 = arith.constant 0 : i32
    %c0_i32_1 = arith.constant 0 : i32
    return %c0_i32, %c0_i32_0 : i32, i32
  }
  func.func @transform_5(%arg0: i32) -> (i32, i32) {
    %c0_i32 = arith.constant 0 : i32
    %c0_i32_0 = arith.constant 0 : i32
    %c0_i32_1 = arith.constant 0 : i32
    return %c0_i32, %c0_i32_0 : i32, i32
  }
  func.func @transform_6(%arg0: i32) -> (i32, i32) {
    %c0_i32 = arith.constant 0 : i32
    %c0_i32_0 = arith.constant 0 : i32
    %c0_i32_1 = arith.constant 0 : i32
    return %c0_i32, %c0_i32_0 : i32, i32
  }
  func.func @transform_7(%arg0: i32) -> (i32, i32, i32) {
    %c0_i32 = arith.constant 0 : i32
    %c0_i32_0 = arith.constant 0 : i32
    %c0_i32_1 = arith.constant 0 : i32
    return %arg0, %c0_i32, %c0_i32_0 : i32, i32, i32
  }
  func.func @transform_8(%arg0: i32) -> (i32, i32, i32) {
    %c0_i32 = arith.constant 0 : i32
    %c0_i32_0 = arith.constant 0 : i32
    %c0_i32_1 = arith.constant 0 : i32
    return %arg0, %c0_i32, %c0_i32_0 : i32, i32, i32
  }
}

module attributes {stable_mosaic.version = 11 : i64} {
  func.func @_spatial_fuse_kernel(%arg0: i32, %arg1: memref<1x8x256xf32, #tpu.memory_space<vmem>>, %arg2: memref<1x8x256xf32, #tpu.memory_space<vmem>>, %arg3: memref<8x72xf32, #tpu.memory_space<vmem>>, %arg4: memref<8x1xf32, #tpu.memory_space<vmem>>, %arg5: memref<8x72xf32, #tpu.memory_space<vmem>>, %arg6: memref<8x1xf32, #tpu.memory_space<vmem>>, %arg7: memref<8x8xf32, #tpu.memory_space<vmem>>, %arg8: memref<8x8xf32, #tpu.memory_space<vmem>>, %arg9: memref<8x1xf32, #tpu.memory_space<vmem>>, %arg10: memref<9x256xf32, #tpu.memory_space<vmem>>, %arg11: memref<1x8x256xf32, #tpu.memory_space<vmem>>) attributes {dimension_semantics = [#tpu.dimension_semantics<parallel>], iteration_bounds = array<i64: 1>, scalar_prefetch = 0 : i64, scratch_operands = 0 : i64, tpu.core_type = #tpu.core_type<tc>, window_params = [{transform_indices = @transform_0, window_bounds = array<i64: 1, 8, 256>}, {transform_indices = @transform_1, window_bounds = array<i64: 1, 8, 256>}, {pipeline_mode = #tpu.pipeline_mode<synchronous>, transform_indices = @transform_2, window_bounds = array<i64: 8, 72>}, {pipeline_mode = #tpu.pipeline_mode<synchronous>, transform_indices = @transform_3, window_bounds = array<i64: 8, 1>}, {pipeline_mode = #tpu.pipeline_mode<synchronous>, transform_indices = @transform_4, window_bounds = array<i64: 8, 72>}, {pipeline_mode = #tpu.pipeline_mode<synchronous>, transform_indices = @transform_5, window_bounds = array<i64: 8, 1>}, {pipeline_mode = #tpu.pipeline_mode<synchronous>, transform_indices = @transform_6, window_bounds = array<i64: 8, 8>}, {pipeline_mode = #tpu.pipeline_mode<synchronous>, transform_indices = @transform_7, window_bounds = array<i64: 8, 8>}, {pipeline_mode = #tpu.pipeline_mode<synchronous>, transform_indices = @transform_8, window_bounds = array<i64: 8, 1>}, {pipeline_mode = #tpu.pipeline_mode<synchronous>, transform_indices = @transform_9, window_bounds = array<i64: 9, 256>}, {transform_indices = @transform_10, window_bounds = array<i64: 1, 8, 256>}]} {
    %c0 = arith.constant 0 : index
    %c0_0 = arith.constant 0 : index
    %c0_1 = arith.constant 0 : index
    %0 = vector.load %arg1[%c0, %c0_0, %c0_1] : memref<1x8x256xf32, #tpu.memory_space<vmem>>, vector<1x8x256xf32>
    %1 = vector.shape_cast %0 : vector<1x8x256xf32> to vector<8x256xf32>
    %c0_2 = arith.constant 0 : index
    %c0_3 = arith.constant 0 : index
    %c0_4 = arith.constant 0 : index
    %2 = vector.load %arg2[%c0_2, %c0_3, %c0_4] : memref<1x8x256xf32, #tpu.memory_space<vmem>>, vector<1x8x256xf32>
    %3 = vector.shape_cast %2 : vector<1x8x256xf32> to vector<8x256xf32>
    %c0_5 = arith.constant 0 : index
    %c0_6 = arith.constant 0 : index
    %4 = vector.load %arg10[%c0_5, %c0_6] : memref<9x256xf32, #tpu.memory_space<vmem>>, vector<9x256xf32>
    %c17_i32 = arith.constant 17 : i32
    %5 = tpu.dynamic_rotate %1 by %c17_i32 dim 1 : vector<8x256xf32>, i32 -> vector<8x256xf32>
    %6 = vector.extract_strided_slice %4 {offsets = [0, 0], sizes = [1, 256], strides = [1, 1]} : vector<9x256xf32> to vector<1x256xf32>
    %7 = vector.broadcast %6 : vector<1x256xf32> to vector<8x256xf32>
    %8 = arith.mulf %5, %7 : vector<8x256xf32>
    %c16_i32 = arith.constant 16 : i32
    %9 = tpu.dynamic_rotate %1 by %c16_i32 dim 1 : vector<8x256xf32>, i32 -> vector<8x256xf32>
    %10 = vector.extract_strided_slice %4 {offsets = [1, 0], sizes = [1, 256], strides = [1, 1]} : vector<9x256xf32> to vector<1x256xf32>
    %11 = vector.broadcast %10 : vector<1x256xf32> to vector<8x256xf32>
    %12 = arith.mulf %9, %11 : vector<8x256xf32>
    %c15_i32 = arith.constant 15 : i32
    %13 = tpu.dynamic_rotate %1 by %c15_i32 dim 1 : vector<8x256xf32>, i32 -> vector<8x256xf32>
    %14 = vector.extract_strided_slice %4 {offsets = [2, 0], sizes = [1, 256], strides = [1, 1]} : vector<9x256xf32> to vector<1x256xf32>
    %15 = vector.broadcast %14 : vector<1x256xf32> to vector<8x256xf32>
    %16 = arith.mulf %13, %15 : vector<8x256xf32>
    %c1_i32 = arith.constant 1 : i32
    %17 = tpu.dynamic_rotate %1 by %c1_i32 dim 1 : vector<8x256xf32>, i32 -> vector<8x256xf32>
    %18 = vector.extract_strided_slice %4 {offsets = [3, 0], sizes = [1, 256], strides = [1, 1]} : vector<9x256xf32> to vector<1x256xf32>
    %19 = vector.broadcast %18 : vector<1x256xf32> to vector<8x256xf32>
    %20 = arith.mulf %17, %19 : vector<8x256xf32>
    %21 = vector.extract_strided_slice %4 {offsets = [4, 0], sizes = [1, 256], strides = [1, 1]} : vector<9x256xf32> to vector<1x256xf32>
    %22 = vector.broadcast %21 : vector<1x256xf32> to vector<8x256xf32>
    %23 = arith.mulf %1, %22 : vector<8x256xf32>
    %c255_i32 = arith.constant 255 : i32
    %24 = tpu.dynamic_rotate %1 by %c255_i32 dim 1 : vector<8x256xf32>, i32 -> vector<8x256xf32>
    %25 = vector.extract_strided_slice %4 {offsets = [5, 0], sizes = [1, 256], strides = [1, 1]} : vector<9x256xf32> to vector<1x256xf32>
    %26 = vector.broadcast %25 : vector<1x256xf32> to vector<8x256xf32>
    %27 = arith.mulf %24, %26 : vector<8x256xf32>
    %c241_i32 = arith.constant 241 : i32
    %28 = tpu.dynamic_rotate %1 by %c241_i32 dim 1 : vector<8x256xf32>, i32 -> vector<8x256xf32>
    %29 = vector.extract_strided_slice %4 {offsets = [6, 0], sizes = [1, 256], strides = [1, 1]} : vector<9x256xf32> to vector<1x256xf32>
    %30 = vector.broadcast %29 : vector<1x256xf32> to vector<8x256xf32>
    %31 = arith.mulf %28, %30 : vector<8x256xf32>
    %c240_i32 = arith.constant 240 : i32
    %32 = tpu.dynamic_rotate %1 by %c240_i32 dim 1 : vector<8x256xf32>, i32 -> vector<8x256xf32>
    %33 = vector.extract_strided_slice %4 {offsets = [7, 0], sizes = [1, 256], strides = [1, 1]} : vector<9x256xf32> to vector<1x256xf32>
    %34 = vector.broadcast %33 : vector<1x256xf32> to vector<8x256xf32>
    %35 = arith.mulf %32, %34 : vector<8x256xf32>
    %c239_i32 = arith.constant 239 : i32
    %36 = tpu.dynamic_rotate %1 by %c239_i32 dim 1 : vector<8x256xf32>, i32 -> vector<8x256xf32>
    %37 = vector.extract_strided_slice %4 {offsets = [8, 0], sizes = [1, 256], strides = [1, 1]} : vector<9x256xf32> to vector<1x256xf32>
    %38 = vector.broadcast %37 : vector<1x256xf32> to vector<8x256xf32>
    %39 = arith.mulf %36, %38 : vector<8x256xf32>
    %40 = tpu.concatenate %8, %12, %16, %20, %23, %27, %31, %35, %39 in 0 : vector<8x256xf32>, vector<8x256xf32>, vector<8x256xf32>, vector<8x256xf32>, vector<8x256xf32>, vector<8x256xf32>, vector<8x256xf32>, vector<8x256xf32>, vector<8x256xf32> -> vector<72x256xf32>
    %c0_7 = arith.constant 0 : index
    %c0_8 = arith.constant 0 : index
    %41 = vector.load %arg3[%c0_7, %c0_8] : memref<8x72xf32, #tpu.memory_space<vmem>>, vector<8x72xf32>
    %cst = arith.constant dense<0.000000e+00> : vector<8x256xf32>
    %42 = tpu.matmul %41, %40, %cst {dimension_numbers = #tpu.dot_dimension_numbers<[1], [0], [0], [1], [0, 0, 1, 1], [], []>} : vector<8x72xf32>, vector<72x256xf32>, vector<8x256xf32> -> vector<8x256xf32>
    %c0_9 = arith.constant 0 : index
    %c0_10 = arith.constant 0 : index
    %43 = vector.load %arg4[%c0_9, %c0_10] : memref<8x1xf32, #tpu.memory_space<vmem>>, vector<8x1xf32>
    %44 = vector.broadcast %43 : vector<8x1xf32> to vector<8x256xf32>
    %45 = arith.addf %42, %44 : vector<8x256xf32>
    %cst_11 = arith.constant 0.000000e+00 : f32
    %46 = vector.broadcast %cst_11 : f32 to vector<8x256xf32>
    %47 = arith.cmpf oge, %45, %46 : vector<8x256xf32>
    %cst_12 = arith.constant 2.000000e-01 : f32
    %48 = vector.broadcast %cst_12 : f32 to vector<8x256xf32>
    %49 = arith.mulf %48, %45 : vector<8x256xf32>
    %50 = arith.select %47, %45, %49 : vector<8x256xi1>, vector<8x256xf32>
    %c17_i32_13 = arith.constant 17 : i32
    %51 = tpu.dynamic_rotate %50 by %c17_i32_13 dim 1 : vector<8x256xf32>, i32 -> vector<8x256xf32>
    %52 = vector.extract_strided_slice %4 {offsets = [0, 0], sizes = [1, 256], strides = [1, 1]} : vector<9x256xf32> to vector<1x256xf32>
    %53 = vector.broadcast %52 : vector<1x256xf32> to vector<8x256xf32>
    %54 = arith.mulf %51, %53 : vector<8x256xf32>
    %c16_i32_14 = arith.constant 16 : i32
    %55 = tpu.dynamic_rotate %50 by %c16_i32_14 dim 1 : vector<8x256xf32>, i32 -> vector<8x256xf32>
    %56 = vector.extract_strided_slice %4 {offsets = [1, 0], sizes = [1, 256], strides = [1, 1]} : vector<9x256xf32> to vector<1x256xf32>
    %57 = vector.broadcast %56 : vector<1x256xf32> to vector<8x256xf32>
    %58 = arith.mulf %55, %57 : vector<8x256xf32>
    %c15_i32_15 = arith.constant 15 : i32
    %59 = tpu.dynamic_rotate %50 by %c15_i32_15 dim 1 : vector<8x256xf32>, i32 -> vector<8x256xf32>
    %60 = vector.extract_strided_slice %4 {offsets = [2, 0], sizes = [1, 256], strides = [1, 1]} : vector<9x256xf32> to vector<1x256xf32>
    %61 = vector.broadcast %60 : vector<1x256xf32> to vector<8x256xf32>
    %62 = arith.mulf %59, %61 : vector<8x256xf32>
    %c1_i32_16 = arith.constant 1 : i32
    %63 = tpu.dynamic_rotate %50 by %c1_i32_16 dim 1 : vector<8x256xf32>, i32 -> vector<8x256xf32>
    %64 = vector.extract_strided_slice %4 {offsets = [3, 0], sizes = [1, 256], strides = [1, 1]} : vector<9x256xf32> to vector<1x256xf32>
    %65 = vector.broadcast %64 : vector<1x256xf32> to vector<8x256xf32>
    %66 = arith.mulf %63, %65 : vector<8x256xf32>
    %67 = vector.extract_strided_slice %4 {offsets = [4, 0], sizes = [1, 256], strides = [1, 1]} : vector<9x256xf32> to vector<1x256xf32>
    %68 = vector.broadcast %67 : vector<1x256xf32> to vector<8x256xf32>
    %69 = arith.mulf %50, %68 : vector<8x256xf32>
    %c255_i32_17 = arith.constant 255 : i32
    %70 = tpu.dynamic_rotate %50 by %c255_i32_17 dim 1 : vector<8x256xf32>, i32 -> vector<8x256xf32>
    %71 = vector.extract_strided_slice %4 {offsets = [5, 0], sizes = [1, 256], strides = [1, 1]} : vector<9x256xf32> to vector<1x256xf32>
    %72 = vector.broadcast %71 : vector<1x256xf32> to vector<8x256xf32>
    %73 = arith.mulf %70, %72 : vector<8x256xf32>
    %c241_i32_18 = arith.constant 241 : i32
    %74 = tpu.dynamic_rotate %50 by %c241_i32_18 dim 1 : vector<8x256xf32>, i32 -> vector<8x256xf32>
    %75 = vector.extract_strided_slice %4 {offsets = [6, 0], sizes = [1, 256], strides = [1, 1]} : vector<9x256xf32> to vector<1x256xf32>
    %76 = vector.broadcast %75 : vector<1x256xf32> to vector<8x256xf32>
    %77 = arith.mulf %74, %76 : vector<8x256xf32>
    %c240_i32_19 = arith.constant 240 : i32
    %78 = tpu.dynamic_rotate %50 by %c240_i32_19 dim 1 : vector<8x256xf32>, i32 -> vector<8x256xf32>
    %79 = vector.extract_strided_slice %4 {offsets = [7, 0], sizes = [1, 256], strides = [1, 1]} : vector<9x256xf32> to vector<1x256xf32>
    %80 = vector.broadcast %79 : vector<1x256xf32> to vector<8x256xf32>
    %81 = arith.mulf %78, %80 : vector<8x256xf32>
    %c239_i32_20 = arith.constant 239 : i32
    %82 = tpu.dynamic_rotate %50 by %c239_i32_20 dim 1 : vector<8x256xf32>, i32 -> vector<8x256xf32>
    %83 = vector.extract_strided_slice %4 {offsets = [8, 0], sizes = [1, 256], strides = [1, 1]} : vector<9x256xf32> to vector<1x256xf32>
    %84 = vector.broadcast %83 : vector<1x256xf32> to vector<8x256xf32>
    %85 = arith.mulf %82, %84 : vector<8x256xf32>
    %86 = tpu.concatenate %54, %58, %62, %66, %69, %73, %77, %81, %85 in 0 : vector<8x256xf32>, vector<8x256xf32>, vector<8x256xf32>, vector<8x256xf32>, vector<8x256xf32>, vector<8x256xf32>, vector<8x256xf32>, vector<8x256xf32>, vector<8x256xf32> -> vector<72x256xf32>
    %c0_21 = arith.constant 0 : index
    %c0_22 = arith.constant 0 : index
    %87 = vector.load %arg5[%c0_21, %c0_22] : memref<8x72xf32, #tpu.memory_space<vmem>>, vector<8x72xf32>
    %cst_23 = arith.constant dense<0.000000e+00> : vector<8x256xf32>
    %88 = tpu.matmul %87, %86, %cst_23 {dimension_numbers = #tpu.dot_dimension_numbers<[1], [0], [0], [1], [0, 0, 1, 1], [], []>} : vector<8x72xf32>, vector<72x256xf32>, vector<8x256xf32> -> vector<8x256xf32>
    %c0_24 = arith.constant 0 : index
    %c0_25 = arith.constant 0 : index
    %89 = vector.load %arg6[%c0_24, %c0_25] : memref<8x1xf32, #tpu.memory_space<vmem>>, vector<8x1xf32>
    %90 = vector.broadcast %89 : vector<8x1xf32> to vector<8x256xf32>
    %91 = arith.addf %88, %90 : vector<8x256xf32>
    %92 = arith.addf %91, %1 : vector<8x256xf32>
    %c0_26 = arith.constant 0 : index
    %c0_27 = arith.constant 0 : index
    %93 = vector.load %arg7[%c0_26, %c0_27] : memref<8x8xf32, #tpu.memory_space<vmem>>, vector<8x8xf32>
    %cst_28 = arith.constant dense<0.000000e+00> : vector<8x256xf32>
    %94 = tpu.matmul %93, %92, %cst_28 {dimension_numbers = #tpu.dot_dimension_numbers<[1], [0], [0], [1], [0, 0, 1, 1], [], []>} : vector<8x8xf32>, vector<8x256xf32>, vector<8x256xf32> -> vector<8x256xf32>
    %c0_29 = arith.constant 0 : index
    %c0_30 = arith.constant 0 : index
    %95 = vector.load %arg8[%c0_29, %c0_30] : memref<8x8xf32, #tpu.memory_space<vmem>>, vector<8x8xf32>
    %cst_31 = arith.constant dense<0.000000e+00> : vector<8x256xf32>
    %96 = tpu.matmul %95, %3, %cst_31 {dimension_numbers = #tpu.dot_dimension_numbers<[1], [0], [0], [1], [0, 0, 1, 1], [], []>} : vector<8x8xf32>, vector<8x256xf32>, vector<8x256xf32> -> vector<8x256xf32>
    %97 = arith.addf %94, %96 : vector<8x256xf32>
    %c0_32 = arith.constant 0 : index
    %c0_33 = arith.constant 0 : index
    %98 = vector.load %arg9[%c0_32, %c0_33] : memref<8x1xf32, #tpu.memory_space<vmem>>, vector<8x1xf32>
    %99 = vector.broadcast %98 : vector<8x1xf32> to vector<8x256xf32>
    %100 = arith.addf %97, %99 : vector<8x256xf32>
    %c0_34 = arith.constant 0 : index
    %c0_35 = arith.constant 0 : index
    %c0_36 = arith.constant 0 : index
    %101 = vector.load %arg11[%c0_34, %c0_35, %c0_36] : memref<1x8x256xf32, #tpu.memory_space<vmem>>, vector<1x8x256xf32>
    %102 = vector.shape_cast %101 : vector<1x8x256xf32> to vector<8x256xf32>
    %103 = vector.shape_cast %100 : vector<8x256xf32> to vector<1x8x256xf32>
    tpu.vector_store %arg11[%c0_34, %c0_35, %c0_36], %103 {strides = array<i32>} : memref<1x8x256xf32, #tpu.memory_space<vmem>>, vector<1x8x256xf32>,
    return
  }
  func.func @transform_0(%arg0: i32) -> (i32, i32, i32) {
    %c0_i32 = arith.constant 0 : i32
    %c0_i32_0 = arith.constant 0 : i32
    %c0_i32_1 = arith.constant 0 : i32
    return %arg0, %c0_i32, %c0_i32_0 : i32, i32, i32
  }
  func.func @transform_1(%arg0: i32) -> (i32, i32, i32) {
    %c0_i32 = arith.constant 0 : i32
    %c0_i32_0 = arith.constant 0 : i32
    %c0_i32_1 = arith.constant 0 : i32
    return %arg0, %c0_i32, %c0_i32_0 : i32, i32, i32
  }
  func.func @transform_2(%arg0: i32) -> (i32, i32) {
    %c0_i32 = arith.constant 0 : i32
    %c0_i32_0 = arith.constant 0 : i32
    %c0_i32_1 = arith.constant 0 : i32
    return %c0_i32, %c0_i32_0 : i32, i32
  }
  func.func @transform_3(%arg0: i32) -> (i32, i32) {
    %c0_i32 = arith.constant 0 : i32
    %c0_i32_0 = arith.constant 0 : i32
    %c0_i32_1 = arith.constant 0 : i32
    return %c0_i32, %c0_i32_0 : i32, i32
  }
  func.func @transform_4(%arg0: i32) -> (i32, i32) {
    %c0_i32 = arith.constant 0 : i32
    %c0_i32_0 = arith.constant 0 : i32
    %c0_i32_1 = arith.constant 0 : i32
    return %c0_i32, %c0_i32_0 : i32, i32
  }
  func.func @transform_5(%arg0: i32) -> (i32, i32) {
    %c0_i32 = arith.constant 0 : i32
    %c0_i32_0 = arith.constant 0 : i32
    %c0_i32_1 = arith.constant 0 : i32
    return %c0_i32, %c0_i32_0 : i32, i32
  }
  func.func @transform_6(%arg0: i32) -> (i32, i32) {
    %c0_i32 = arith.constant 0 : i32
    %c0_i32_0 = arith.constant 0 : i32
    %c0_i32_1 = arith.constant 0 : i32
    return %c0_i32, %c0_i32_0 : i32, i32
  }
  func.func @transform_7(%arg0: i32) -> (i32, i32) {
    %c0_i32 = arith.constant 0 : i32
    %c0_i32_0 = arith.constant 0 : i32
    %c0_i32_1 = arith.constant 0 : i32
    return %c0_i32, %c0_i32_0 : i32, i32
  }
  func.func @transform_8(%arg0: i32) -> (i32, i32) {
    %c0_i32 = arith.constant 0 : i32
    %c0_i32_0 = arith.constant 0 : i32
    %c0_i32_1 = arith.constant 0 : i32
    return %c0_i32, %c0_i32_0 : i32, i32
  }
  func.func @transform_9(%arg0: i32) -> (i32, i32) {
    %c0_i32 = arith.constant 0 : i32
    %c0_i32_0 = arith.constant 0 : i32
    %c0_i32_1 = arith.constant 0 : i32
    return %c0_i32, %c0_i32_0 : i32, i32
  }
  func.func @transform_10(%arg0: i32) -> (i32, i32, i32) {
    %c0_i32 = arith.constant 0 : i32
    %c0_i32_0 = arith.constant 0 : i32
    %c0_i32_1 = arith.constant 0 : i32
    return %arg0, %c0_i32, %c0_i32_0 : i32, i32, i32
  }
}

</mosaic_0001>

<llo_original>
// kernel: reverse.1
$region0: #{reverse.1}
  %s0 = inlined_call_operand.vmem [shape: f32[2,4,16,7], index: 0, kind: input, shape index: {}]
  %s1 = inlined_call_operand.vmem [shape: f32[2,4,16,7], index: 1, kind: output, shape index: {}]
  $region1: #{reverse.1} parent=0
    #allocation0 [shape = 'u8[65536]{0}', space=vmem, size = 0x10000, scoped, tag = 'operand span for operand 0']
    #allocation1 [shape = 'u8[32768]{0}', space=vmem, size = 0x8000, scoped, tag = 'operand span for operand 1']
    %s2 = scalar_lea.vmem [#allocation0], 8
    // Predicated region
    $region2: #{reverse.1} parent=1 // pred_check
      _
    $region3: #{reverse.1} parent=1 // pred_check_branch
      %4 = sbr.rel (0) target = $region5
    $region4: #{reverse.1} parent=1 // pred_region
      // Predicated region
      $region6: #{reverse.1} parent=4 // pred_check
        _
      $region7: #{reverse.1} parent=4 // pred_check_branch
        %6 = sbr.rel (0) target = $region9
      $region8: #{reverse.1} parent=4 // pred_region
        // Predicated region
        $region21: #{reverse.1} parent=8 // pred_check
          _
        $region22: #{reverse.1} parent=8 // pred_check_branch
          %36 = sbr.rel (0) target = $region24
        $region23: #{reverse.1} parent=8 // pred_region
          loop: start=0, step=1, limit=1
          $region25: #{reverse.1} parent=23 // loop_pre_header
            _
          $region26: #{reverse.1} parent=23 // loop_header
            %s38 = sphi 0, %s42
            %p39 = scmp.ge.s32.totalorder %s38, 1
            %s43 = sphi %s0, %s0
            %s44 = sphi %s2, %s2
          $region27: #{reverse.1} parent=23 // loop_header_branch
            %41 = sbr.rel (%p39) target = $region31
          $region28: #{reverse.1} parent=23 // loop_body
            %v45 = vld [vmem:[%s43] sm:$0xff]
            %46 = vst [vmem:[%s44] sm:$0xff] %v45
            %v47 = vld [vmem:[%s43 + $0x8] sm:$0xff]
            %48 = vst [vmem:[%s44 + $0x10] sm:$0xff] %v47
            %v49 = vld [vmem:[%s43 + $0x10] sm:$0xff]
            %50 = vst [vmem:[%s44 + $0x20] sm:$0xff] %v49
            %v51 = vld [vmem:[%s43 + $0x18] sm:$0xff]
            %52 = vst [vmem:[%s44 + $0x30] sm:$0xff] %v51
            %v53 = vld [vmem:[%s43 + $0x20] sm:$0xff]
            %54 = vst [vmem:[%s44 + $0x40] sm:$0xff] %v53
            %v55 = vld [vmem:[%s43 + $0x28] sm:$0xff]
            %56 = vst [vmem:[%s44 + $0x50] sm:$0xff] %v55
            %v57 = vld [vmem:[%s43 + $0x30] sm:$0xff]
            %58 = vst [vmem:[%s44 + $0x60] sm:$0xff] %v57
            %v59 = vld [vmem:[%s43 + $0x38] sm:$0xff]
            %60 = vst [vmem:[%s44 + $0x70] sm:$0xff] %v59
          $region29: #{reverse.1} parent=23 // loop_footer
            %s42 = sadd.s32 1, %s38
          $region30: #{reverse.1} parent=23 // loop_footer_branch
            %37 = sbr.rel target = $region26
          $region31: #{reverse.1} parent=23 // loop_exit
            _
        $region24: #{reverse.1} parent=8 // pred_fallthru
          _
        // Predicated region
        $region32: #{reverse.1} parent=8 // pred_check
          _
        $region33: #{reverse.1} parent=8 // pred_check_branch
          %62 = sbr.rel target = $region35
        $region34: #{reverse.1} parent=8 // pred_region
          _
        $region35: #{reverse.1} parent=8 // pred_fallthru
          _
      $region9: #{reverse.1} parent=4 // pred_fallthru
        _
      // Predicated region
      $region10: #{reverse.1} parent=4 // pred_check
        _
      $region11: #{reverse.1} parent=4 // pred_check_branch
        %8 = sbr.rel target = $region13
      $region12: #{reverse.1} parent=4 // pred_region
        %s10 = ssub.s32 256, 1
        loop: start=0, step=1, limit=1
        $region14: #{reverse.1} parent=12 // loop_pre_header
          _
        $region15: #{reverse.1} parent=12 // loop_header
          %s12 = sphi 0, %s16
          %p13 = scmp.ge.s32.totalorder %s12, 1
          %s17 = sphi %s0, %s0
          %s18 = sphi %s2, %s2
        $region16: #{reverse.1} parent=12 // loop_header_branch
          %15 = sbr.rel (%p13) target = $region20
        $region17: #{reverse.1} parent=12 // loop_body
          %v19 = vld [vmem:[%s17] sm:%s10]
          %20 = vst [vmem:[%s18] sm:%s10] %v19
          %v21 = vld [vmem:[%s17 + $0x8] sm:%s10]
          %22 = vst [vmem:[%s18 + $0x10] sm:%s10] %v21
          %v23 = vld [vmem:[%s17 + $0x10] sm:%s10]
          %24 = vst [vmem:[%s18 + $0x20] sm:%s10] %v23
          %v25 = vld [vmem:[%s17 + $0x18] sm:%s10]
          %26 = vst [vmem:[%s18 + $0x30] sm:%s10] %v25
          %v27 = vld [vmem:[%s17 + $0x20] sm:%s10]
          %28 = vst [vmem:[%s18 + $0x40] sm:%s10] %v27
          %v29 = vld [vmem:[%s17 + $0x28] sm:%s10]
          %30 = vst [vmem:[%s18 + $0x50] sm:%s10] %v29
          %v31 = vld [vmem:[%s17 + $0x30] sm:%s10]
          %32 = vst [vmem:[%s18 + $0x60] sm:%s10] %v31
          %v33 = vld [vmem:[%s17 + $0x38] sm:%s10]
          %34 = vst [vmem:[%s18 + $0x70] sm:%s10] %v33
        $region18: #{reverse.1} parent=12 // loop_footer
          %s16 = sadd.s32 1, %s12
        $region19: #{reverse.1} parent=12 // loop_footer_branch
          %11 = sbr.rel target = $region15
        $region20: #{reverse.1} parent=12 // loop_exit
          _
      $region13: #{reverse.1} parent=4 // pred_fallthru
        _
    $region5: #{reverse.1} parent=1 // pred_fallthru
      _
    %63 = vnop
    %s64 = scalar_lea.vmem [#allocation0], 7
    %v65 = vld [vmem:[%s64] ss:$-1 sm:$0xff]
    %v66 = vrot.slane %v65, 1
    %67 = vst [vmem:[#allocation1] sm:$0xff] %v66
    %s68 = scalar_lea.vmem [#allocation0], 8
    %s69 = scalar_lea.vmem %s68, 7 [#allocation0]
    %v70 = vld [vmem:[%s69] ss:$-1 sm:$0xff]
    %v71 = vrot.slane %v70, 1
    %v72 = vlaneseq
    %v73 = vshrl.u32 %v72, 7
    %vm74 = vcmp.lt.s32.totalorder %v73, 7
    %75 = vst.msk [vmem:[#allocation1] sm:$0xff] %vm74, %v71
    %s76 = scalar_lea.vmem [#allocation1], 8
    %s77 = scalar_lea.vmem [#allocation0], 16
    %s78 = scalar_lea.vmem %s77, 7 [#allocation0]
    %v79 = vld [vmem:[%s78] ss:$-1 sm:$0xff]
    %v80 = vrot.slane %v79, 1
    %81 = vst [vmem:[%s76] sm:$0xff] %v80
    %s82 = scalar_lea.vmem %s77, 8 [#allocation0]
    %s83 = scalar_lea.vmem %s82, 7 [#allocation0]
    %v84 = vld [vmem:[%s83] ss:$-1 sm:$0xff]
    %v85 = vrot.slane %v84, 1
    %v86 = vlaneseq
    %v87 = vshrl.u32 %v86, 7
    %vm88 = vcmp.lt.s32.totalorder %v87, 7
    %89 = vst.msk [vmem:[%s76] sm:$0xff] %vm88, %v85
    %s90 = scalar_lea.vmem [#allocation1], 16
    %s91 = scalar_lea.vmem [#allocation0], 32
    %s92 = scalar_lea.vmem %s91, 7 [#allocation0]
    %v93 = vld [vmem:[%s92] ss:$-1 sm:$0xff]
    %v94 = vrot.slane %v93, 1
    %95 = vst [vmem:[%s90] sm:$0xff] %v94
    %s96 = scalar_lea.vmem %s91, 8 [#allocation0]
    %s97 = scalar_lea.vmem %s96, 7 [#allocation0]
    %v98 = vld [vmem:[%s97] ss:$-1 sm:$0xff]
    %v99 = vrot.slane %v98, 1
    %v100 = vlaneseq
    %v101 = vshrl.u32 %v100, 7
    %vm102 = vcmp.lt.s32.totalorder %v101, 7
    %103 = vst.msk [vmem:[%s90] sm:$0xff] %vm102, %v99
    %s104 = scalar_lea.vmem [#allocation1], 24
    %s105 = scalar_lea.vmem [#allocation0], 48
    %s106 = scalar_lea.vmem %s105, 7 [#allocation0]
    %v107 = vld [vmem:[%s106] ss:$-1 sm:$0xff]
    %v108 = vrot.slane %v107, 1
    %109 = vst [vmem:[%s104] sm:$0xff] %v108
    %s110 = scalar_lea.vmem %s105, 8 [#allocation0]
    %s111 = scalar_lea.vmem %s110, 7 [#allocation0]
    %v112 = vld [vmem:[%s111] ss:$-1 sm:$0xff]
    %v113 = vrot.slane %v112, 1
    %v114 = vlaneseq
    %v115 = vshrl.u32 %v114, 7
    %vm116 = vcmp.lt.s32.totalorder %v115, 7
    %117 = vst.msk [vmem:[%s104] sm:$0xff] %vm116, %v113
    %s118 = scalar_lea.vmem [#allocation1], 32
    %s119 = scalar_lea.vmem [#allocation0], 64
    %s120 = scalar_lea.vmem %s119, 7 [#allocation0]
    %v121 = vld [vmem:[%s120] ss:$-1 sm:$0xff]
    %v122 = vrot.slane %v121, 1
    %123 = vst [vmem:[%s118] sm:$0xff] %v122
    %s124 = scalar_lea.vmem %s119, 8 [#allocation0]
    %s125 = scalar_lea.vmem %s124, 7 [#allocation0]
    %v126 = vld [vmem:[%s125] ss:$-1 sm:$0xff]
    %v127 = vrot.slane %v126, 1
    %v128 = vlaneseq
    %v129 = vshrl.u32 %v128, 7
    %vm130 = vcmp.lt.s32.totalorder %v129, 7
    %131 = vst.msk [vmem:[%s118] sm:$0xff] %vm130, %v127
    %s132 = scalar_lea.vmem [#allocation1], 40
    %s133 = scalar_lea.vmem [#allocation0], 80
    %s134 = scalar_lea.vmem %s133, 7 [#allocation0]
    %v135 = vld [vmem:[%s134] ss:$-1 sm:$0xff]
    %v136 = vrot.slane %v135, 1
    %137 = vst [vmem:[%s132] sm:$0xff] %v136
    %s138 = scalar_lea.vmem %s133, 8 [#allocation0]
    %s139 = scalar_lea.vmem %s138, 7 [#allocation0]
    %v140 = vld [vmem:[%s139] ss:$-1 sm:$0xff]
    %v141 = vrot.slane %v140, 1
    %v142 = vlaneseq
    %v143 = vshrl.u32 %v142, 7
    %vm144 = vcmp.lt.s32.totalorder %v143, 7
    %145 = vst.msk [vmem:[%s132] sm:$0xff] %vm144, %v141
    %s146 = scalar_lea.vmem [#allocation1], 48
    %s147 = scalar_lea.vmem [#allocation0], 96
    %s148 = scalar_lea.vmem %s147, 7 [#allocation0]
    %v149 = vld [vmem:[%s148] ss:$-1 sm:$0xff]
    %v150 = vrot.slane %v149, 1
    %151 = vst [vmem:[%s146] sm:$0xff] %v150
    %s152 = scalar_lea.vmem %s147, 8 [#allocation0]
    %s153 = scalar_lea.vmem %s152, 7 [#allocation0]
    %v154 = vld [vmem:[%s153] ss:$-1 sm:$0xff]
    %v155 = vrot.slane %v154, 1
    %v156 = vlaneseq
    %v157 = vshrl.u32 %v156, 7
    %vm158 = vcmp.lt.s32.totalorder %v157, 7
    %159 = vst.msk [vmem:[%s146] sm:$0xff] %vm158, %v155
    %s160 = scalar_lea.vmem [#allocation1], 56
    %s161 = scalar_lea.vmem [#allocation0], 112
    %s162 = scalar_lea.vmem %s161, 7 [#allocation0]
    %v163 = vld [vmem:[%s162] ss:$-1 sm:$0xff]
    %v164 = vrot.slane %v163, 1
    %165 = vst [vmem:[%s160] sm:$0xff] %v164
    %s166 = scalar_lea.vmem %s161, 8 [#allocation0]
    %s167 = scalar_lea.vmem %s166, 7 [#allocation0]
    %v168 = vld [vmem:[%s167] ss:$-1 sm:$0xff]
    %v169 = vrot.slane %v168, 1
    %v170 = vlaneseq
    %v171 = vshrl.u32 %v170, 7
    %vm172 = vcmp.lt.s32.totalorder %v171, 7
    %173 = vst.msk [vmem:[%s160] sm:$0xff] %vm172, %v169
    // Predicated region
    $region36: #{reverse.1} parent=1 // pred_check
      _
    $region37: #{reverse.1} parent=1 // pred_check_branch
      %175 = sbr.rel (0) target = $region39
    $region38: #{reverse.1} parent=1 // pred_region
      // Predicated region
      $region40: #{reverse.1} parent=38 // pred_check
        _
      $region41: #{reverse.1} parent=38 // pred_check_branch
        %177 = sbr.rel (0) target = $region43
      $region42: #{reverse.1} parent=38 // pred_region
        // Predicated region
        $region55: #{reverse.1} parent=42 // pred_check
          _
        $region56: #{reverse.1} parent=42 // pred_check_branch
          %207 = sbr.rel (0) target = $region58
        $region57: #{reverse.1} parent=42 // pred_region
          loop: start=0, step=1, limit=1
          $region59: #{reverse.1} parent=57 // loop_pre_header
            _
          $region60: #{reverse.1} parent=57 // loop_header
            %s209 = sphi 0, %s213
            %p210 = scmp.ge.s32.totalorder %s209, 1
            %s214 = sphi [#allocation1], [#allocation1]
            %s215 = sphi %s1, %s1
          $region61: #{reverse.1} parent=57 // loop_header_branch
            %212 = sbr.rel (%p210) target = $region65
          $region62: #{reverse.1} parent=57 // loop_body
            %v216 = vld [vmem:[%s214] sm:$0xff]
            %217 = vst [vmem:[%s215] sm:$0xff] %v216
            %v218 = vld [vmem:[%s214 + $0x8] sm:$0xff]
            %219 = vst [vmem:[%s215 + $0x8] sm:$0xff] %v218
            %v220 = vld [vmem:[%s214 + $0x10] sm:$0xff]
            %221 = vst [vmem:[%s215 + $0x10] sm:$0xff] %v220
            %v222 = vld [vmem:[%s214 + $0x18] sm:$0xff]
            %223 = vst [vmem:[%s215 + $0x18] sm:$0xff] %v222
            %v224 = vld [vmem:[%s214 + $0x20] sm:$0xff]
            %225 = vst [vmem:[%s215 + $0x20] sm:$0xff] %v224
            %v226 = vld [vmem:[%s214 + $0x28] sm:$0xff]
            %227 = vst [vmem:[%s215 + $0x28] sm:$0xff] %v226
            %v228 = vld [vmem:[%s214 + $0x30] sm:$0xff]
            %229 = vst [vmem:[%s215 + $0x30] sm:$0xff] %v228
            %v230 = vld [vmem:[%s214 + $0x38] sm:$0xff]
            %231 = vst [vmem:[%s215 + $0x38] sm:$0xff] %v230
          $region63: #{reverse.1} parent=57 // loop_footer
            %s213 = sadd.s32 1, %s209
          $region64: #{reverse.1} parent=57 // loop_footer_branch
            %208 = sbr.rel target = $region60
          $region65: #{reverse.1} parent=57 // loop_exit
            _
        $region58: #{reverse.1} parent=42 // pred_fallthru
          _
        // Predicated region
        $region66: #{reverse.1} parent=42 // pred_check
          _
        $region67: #{reverse.1} parent=42 // pred_check_branch
          %233 = sbr.rel target = $region69
        $region68: #{reverse.1} parent=42 // pred_region
          _
        $region69: #{reverse.1} parent=42 // pred_fallthru
          _
      $region43: #{reverse.1} parent=38 // pred_fallthru
        _
      // Predicated region
      $region44: #{reverse.1} parent=38 // pred_check
        _
      $region45: #{reverse.1} parent=38 // pred_check_branch
        %179 = sbr.rel target = $region47
      $region46: #{reverse.1} parent=38 // pred_region
        %s181 = ssub.s32 256, 1
        loop: start=0, step=1, limit=1
        $region48: #{reverse.1} parent=46 // loop_pre_header
          _
        $region49: #{reverse.1} parent=46 // loop_header
          %s183 = sphi 0, %s187
          %p184 = scmp.ge.s32.totalorder %s183, 1
          %s188 = sphi [#allocation1], [#allocation1]
          %s189 = sphi %s1, %s1
        $region50: #{reverse.1} parent=46 // loop_header_branch
          %186 = sbr.rel (%p184) target = $region54
        $region51: #{reverse.1} parent=46 // loop_body
          %v190 = vld [vmem:[%s188] sm:%s181]
          %191 = vst [vmem:[%s189] sm:%s181] %v190
          %v192 = vld [vmem:[%s188 + $0x8] sm:%s181]
          %193 = vst [vmem:[%s189 + $0x8] sm:%s181] %v192
          %v194 = vld [vmem:[%s188 + $0x10] sm:%s181]
          %195 = vst [vmem:[%s189 + $0x10] sm:%s181] %v194
          %v196 = vld [vmem:[%s188 + $0x18] sm:%s181]
          %197 = vst [vmem:[%s189 + $0x18] sm:%s181] %v196
          %v198 = vld [vmem:[%s188 + $0x20] sm:%s181]
          %199 = vst [vmem:[%s189 + $0x20] sm:%s181] %v198
          %v200 = vld [vmem:[%s188 + $0x28] sm:%s181]
          %201 = vst [vmem:[%s189 + $0x28] sm:%s181] %v200
          %v202 = vld [vmem:[%s188 + $0x30] sm:%s181]
          %203 = vst [vmem:[%s189 + $0x30] sm:%s181] %v202
          %v204 = vld [vmem:[%s188 + $0x38] sm:%s181]
          %205 = vst [vmem:[%s189 + $0x38] sm:%s181] %v204
        $region52: #{reverse.1} parent=46 // loop_footer
          %s187 = sadd.s32 1, %s183
        $region53: #{reverse.1} parent=46 // loop_footer_branch
          %182 = sbr.rel target = $region49
        $region54: #{reverse.1} parent=46 // loop_exit
          _
      $region47: #{reverse.1} parent=38 // pred_fallthru
        _
    $region39: #{reverse.1} parent=1 // pred_fallthru
      _
    %234 = vnop

// kernel: mffe_forward.2
$region0: #{mffe_forward.2}
  #allocation0 [shape = 'u32[]', space=smem, size = 0x4, offset = 0x4, fixed_abs, tag = 'smem constant byte address 0x4 - core index']
  #allocation1 [shape = 'u32[72,128]{1,0:T(1,128)}', space=vmem, size = 0x9000, scoped, tag = 'internal scratch']
  %s0 = inlined_call_operand.vmem [shape: f32[1,8,256], index: 0, kind: input, shape index: {}]
  %s1 = inlined_call_operand.vmem [shape: f32[1,8,256], index: 1, kind: input, shape index: {}]
  %s2 = inlined_call_operand.vmem [shape: f32[8,72], index: 2, kind: input, shape index: {}]
  %s3 = inlined_call_operand.vmem [shape: f32[8,1], index: 3, kind: input, shape index: {}]
  %s4 = inlined_call_operand.vmem [shape: f32[8,72], index: 4, kind: input, shape index: {}]
  %s5 = inlined_call_operand.vmem [shape: f32[8,1], index: 5, kind: input, shape index: {}]
  %s6 = inlined_call_operand.vmem [shape: f32[9,256], index: 6, kind: input, shape index: {}]
  %s7 = inlined_call_operand.vmem [shape: f32[1,8,256], index: 7, kind: output, shape index: {0}]
  %s8 = inlined_call_operand.vmem [shape: f32[1,8,256], index: 8, kind: output, shape index: {1}]
  %9 = xla_tuple %s7, %s8
  %s10 = sld [smem:[#allocation0]]
  $region46: #{mffe_forward.2} parent=0
    _
  %s12 = ssub.s32 1, %s10
  %s13 = scalar_select 0, %s12, %s10
  // Predicated region
  $region2: #{mffe_forward.2} parent=0 // pred_check
    _
  $region3: #{mffe_forward.2} parent=0 // pred_check_branch
    %15 = sbr.rel (0) target = $region5
  $region4: #{mffe_forward.2} parent=0 // pred_region
    _
  $region5: #{mffe_forward.2} parent=0 // pred_fallthru
    _
  // Predicated region
  $region6: #{mffe_forward.2} parent=0 // pred_check
    _
  $region7: #{mffe_forward.2} parent=0 // pred_check_branch
    %17 = sbr.rel (0) target = $region9
  $region8: #{mffe_forward.2} parent=0 // pred_region
    _
  $region9: #{mffe_forward.2} parent=0 // pred_fallthru
    _
  // Predicated region
  $region10: #{mffe_forward.2} parent=0 // pred_check
    _
  $region11: #{mffe_forward.2} parent=0 // pred_check_branch
    %19 = sbr.rel (0) target = $region13
  $region12: #{mffe_forward.2} parent=0 // pred_region
    _
  $region13: #{mffe_forward.2} parent=0 // pred_fallthru
    _
  // Predicated region
  $region14: #{mffe_forward.2} parent=0 // pred_check
    _
  $region15: #{mffe_forward.2} parent=0 // pred_check_branch
    %21 = sbr.rel (0) target = $region17
  $region16: #{mffe_forward.2} parent=0 // pred_region
    _
  $region17: #{mffe_forward.2} parent=0 // pred_fallthru
    _
  // Predicated region
  $region18: #{mffe_forward.2} parent=0 // pred_check
    _
  $region19: #{mffe_forward.2} parent=0 // pred_check_branch
    %23 = sbr.rel (0) target = $region21
  $region20: #{mffe_forward.2} parent=0 // pred_region
    _
  $region21: #{mffe_forward.2} parent=0 // pred_fallthru
    _
  // Predicated region
  $region22: #{mffe_forward.2} parent=0 // pred_check
    _
  $region23: #{mffe_forward.2} parent=0 // pred_check_branch
    %25 = sbr.rel (0) target = $region25
  $region24: #{mffe_forward.2} parent=0 // pred_region
    _
  $region25: #{mffe_forward.2} parent=0 // pred_fallthru
    _
  // Predicated region
  $region26: #{mffe_forward.2} parent=0 // pred_check
    _
  $region27: #{mffe_forward.2} parent=0 // pred_check_branch
    %27 = sbr.rel (0) target = $region29
  $region28: #{mffe_forward.2} parent=0 // pred_region
    _
  $region29: #{mffe_forward.2} parent=0 // pred_fallthru
    _
  %v28 = vld [vmem:[%s0] sm:$0xff]
  %v29 = vld [vmem:[%s0 + $0x8] sm:$0xff]
  %v30 = vld [vmem:[%s1] sm:$0xff]
  %v31 = vld [vmem:[%s1 + $0x8] sm:$0xff]
  %v32 = vld [vmem:[%s6] sm:$0xff]
  %v33 = vld [vmem:[%s6 + $0x8] sm:$0xff]
  %v34 = vld [vmem:[%s6 + $0x10] sm:$0x1]
  %v35 = vld [vmem:[%s6 + $0x18] sm:$0x1]
  %v36 = vmul.f32 %v28, %v28
  %v37 = vmul.f32 %v29, %v29
  %v38 = vmul.f32 %v30, %v30
  %v39 = vmul.f32 %v31, %v31
  %v40 = vadd.f32 %v36, %v38
  %v41 = vadd.f32 %v37, %v39
  %v42 = vrsqrt.pop %v40
  %v43 = vmul.f32 %v42, %v40
  %v44 = vmul.f32 %v43, %v42
  %v45 = vmul.f32 0.5, %v44
  %v46 = vsub.f32 1.5, %v45
  %v47 = vmul.f32 %v42, %v46
  %v48 = vmul.f32 %v40, %v47
  %vm49 = vcmp.eq.f32.partialorder %v40, inf
  %v50 = vsel %vm49, %v40, %v48
  %vm51 = vcmp.eq.f32.partialorder %v40, 0.0
  %v52 = vand.u32 %v40, 2147483648
  %v53 = vsel %vm51, %v52, %v50
  %v54 = vrsqrt.pop %v41
  %v55 = vmul.f32 %v54, %v41
  %v56 = vmul.f32 %v55, %v54
  %v57 = vmul.f32 0.5, %v56
  %v58 = vsub.f32 1.5, %v57
  %v59 = vmul.f32 %v54, %v58
  %v60 = vmul.f32 %v41, %v59
  %vm61 = vcmp.eq.f32.partialorder %v41, inf
  %v62 = vsel %vm61, %v41, %v60
  %vm63 = vcmp.eq.f32.partialorder %v41, 0.0
  %v64 = vand.u32 %v41, 2147483648
  %v65 = vsel %vm63, %v64, %v62
  %66 = vrot.lane.b32.xlu0 %v53, 10
  %v67 = vpop.permute.xlu0 %66
  %68 = vrot.lane.b32.xlu0 %v65, 10
  %v69 = vpop.permute.xlu0 %68
  %v70 = vlaneseq
  %v71 = vand.u32 %v70, 127
  %vm72 = vcmp.lt.s32.totalorder %v71, 10
  %v73 = vsel %vm72, %v67, %v69
  %v74 = vsel %vm72, %v69, %v67
  %v75 = vperm.slane %v32, 0
  %v76 = vperm.slane %v33, 0
  %v77 = vmul.f32 %v74, %v75
  %v78 = vmul.f32 %v73, %v76
  %79 = vrot.lane.b32.xlu0 %v53, 9
  %v80 = vpop.permute.xlu0 %79
  %81 = vrot.lane.b32.xlu0 %v65, 9
  %v82 = vpop.permute.xlu0 %81
  %vm83 = vcmp.lt.s32.totalorder %v71, 9
  %v84 = vsel %vm83, %v80, %v82
  %v85 = vsel %vm83, %v82, %v80
  %v86 = vperm.slane %v32, 1
  %v87 = vperm.slane %v33, 1
  %v88 = vmul.f32 %v85, %v86
  %v89 = vmul.f32 %v84, %v87
  %90 = vrot.lane.b32.xlu0 %v53, 8
  %v91 = vpop.permute.xlu0 %90
  %92 = vrot.lane.b32.xlu0 %v65, 8
  %v93 = vpop.permute.xlu0 %92
  %vm94 = vcmp.lt.s32.totalorder %v71, 8
  %v95 = vsel %vm94, %v91, %v93
  %v96 = vsel %vm94, %v93, %v91
  %v97 = vperm.slane %v32, 2
  %v98 = vperm.slane %v33, 2
  %v99 = vmul.f32 %v96, %v97
  %v100 = vmul.f32 %v95, %v98
  %101 = vrot.lane.b32.xlu0 %v53, 1
  %v102 = vpop.permute.xlu0 %101
  %103 = vrot.lane.b32.xlu0 %v65, 1
  %v104 = vpop.permute.xlu0 %103
  %vm105 = vcmp.lt.s32.totalorder %v71, 1
  %v106 = vsel %vm105, %v102, %v104
  %v107 = vsel %vm105, %v104, %v102
  %v108 = vperm.slane %v32, 3
  %v109 = vperm.slane %v33, 3
  %v110 = vmul.f32 %v107, %v108
  %v111 = vmul.f32 %v106, %v109
  %v112 = vperm.slane %v32, 4
  %v113 = vperm.slane %v33, 4
  %v114 = vmul.f32 %v53, %v112
  %v115 = vmul.f32 %v65, %v113
  %116 = vrot.lane.b32.xlu0 %v53, 127
  %v117 = vpop.permute.xlu0 %116
  %118 = vrot.lane.b32.xlu0 %v65, 127
  %v119 = vpop.permute.xlu0 %118
  %vm120 = vcmp.lt.s32.totalorder %v71, 127
  %v121 = vsel %vm120, %v117, %v119
  %v122 = vsel %vm120, %v119, %v117
  %v123 = vperm.slane %v32, 5
  %v124 = vperm.slane %v33, 5
  %v125 = vmul.f32 %v121, %v123
  %v126 = vmul.f32 %v122, %v124
  %127 = vrot.lane.b32.xlu0 %v53, 120
  %v128 = vpop.permute.xlu0 %127
  %129 = vrot.lane.b32.xlu0 %v65, 120
  %v130 = vpop.permute.xlu0 %129
  %vm131 = vcmp.lt.s32.totalorder %v71, 120
  %v132 = vsel %vm131, %v128, %v130
  %v133 = vsel %vm131, %v130, %v128
  %v134 = vperm.slane %v32, 6
  %v135 = vperm.slane %v33, 6
  %v136 = vmul.f32 %v132, %v134
  %v137 = vmul.f32 %v133, %v135
  %138 = vrot.lane.b32.xlu0 %v53, 119
  %v139 = vpop.permute.xlu0 %138
  %140 = vrot.lane.b32.xlu0 %v65, 119
  %v141 = vpop.permute.xlu0 %140
  %vm142 = vcmp.lt.s32.totalorder %v71, 119
  %v143 = vsel %vm142, %v139, %v141
  %v144 = vsel %vm142, %v141, %v139
  %v145 = vperm.slane %v32, 7
  %v146 = vperm.slane %v33, 7
  %v147 = vmul.f32 %v143, %v145
  %v148 = vmul.f32 %v144, %v146
  %149 = vrot.lane.b32.xlu0 %v53, 118
  %v150 = vpop.permute.xlu0 %149
  %151 = vrot.lane.b32.xlu0 %v65, 118
  %v152 = vpop.permute.xlu0 %151
  %vm153 = vcmp.lt.s32.totalorder %v71, 118
  %v154 = vsel %vm153, %v150, %v152
  %v155 = vsel %vm153, %v152, %v150
  %v156 = vperm.slane %v34, 0
  %v157 = vperm.slane %v35, 0
  %v158 = vmul.f32 %v154, %v156
  %v159 = vmul.f32 %v155, %v157
  %v160 = vld [vmem:[%s2] sm:$0xff]
  %v161 = vld [vmem:[%s3] sm:$0xff]
  %163 = vset.pattern.permute.xlu0 0
  %164 = vperm.xlu0 %163, %v161
  %v165 = vpop.permute.xlu0 %164
  %vm167 = vcmask 588800
  %v169 = vsel %vm167, %v160, 0
  %171 = vmatpush.msra.mxu0 0.0
  %172 = vmatpush.msra.mxu0 0.0
  %173 = vmatpush.msra.mxu0 0.0
  %174 = vmatpush.msra.mxu0 0.0
  %175 = vmatpush.msra.mxu0 0.0
  %176 = vmatpush.msra.mxu0 0.0
  %177 = vmatpush.msra.mxu0 0.0
  %178 = vmatpush.msra.mxu0 %v158
  %179 = vmatpush.msra.mxu0 %v147
  %180 = vmatpush.msra.mxu0 %v136
  %181 = vmatpush.msra.mxu0 %v125
  %182 = vmatpush.msra.mxu0 %v114
  %183 = vmatpush.msra.mxu0 %v110
  %184 = vmatpush.msra.mxu0 %v99
  %185 = vmatpush.msra.mxu0 %v88
  %186 = vmatpush.msra.mxu0 %v77
  %187 = vmatmul.f32.gmra.mxu0 %v169
  %v188 = vpop.f32.mrf.mxu0
  %v189 = vadd.f32 %v165, %v188
  %190 = vdwg.mxu0
  %191 = vmatpush.msra.mxu0 0.0
  %192 = vmatpush.msra.mxu0 0.0
  %193 = vmatpush.msra.mxu0 0.0
  %194 = vmatpush.msra.mxu0 0.0
  %195 = vmatpush.msra.mxu0 0.0
  %196 = vmatpush.msra.mxu0 0.0
  %197 = vmatpush.msra.mxu0 0.0
  %198 = vmatpush.msra.mxu0 %v159
  %199 = vmatpush.msra.mxu0 %v148
  %200 = vmatpush.msra.mxu0 %v137
  %201 = vmatpush.msra.mxu0 %v126
  %202 = vmatpush.msra.mxu0 %v115
  %203 = vmatpush.msra.mxu0 %v111
  %204 = vmatpush.msra.mxu0 %v100
  %205 = vmatpush.msra.mxu0 %v89
  %206 = vmatpush.msra.mxu0 %v78
  %207 = vmatmul.f32.gmra.mxu0 %v169
  %v208 = vpop.f32.mrf.mxu0
  %v209 = vadd.f32 %v165, %v208
  %210 = vdwg.mxu0
  %vm211 = vcmp.ge.f32.partialorder %v189, 0.0
  %vm212 = vcmp.ge.f32.partialorder %v209, 0.0
  %v213 = vmul.f32 %v189, 0.2
  %v214 = vmul.f32 %v209, 0.2
  %v215 = vsel %vm211, %v189, %v213
  %v216 = vsel %vm212, %v209, %v214
  %217 = vrot.lane.b32.xlu0 %v215, 10
  %v218 = vpop.permute.xlu0 %217
  %219 = vrot.lane.b32.xlu0 %v216, 10
  %v220 = vpop.permute.xlu0 %219
  %v221 = vsel %vm72, %v218, %v220
  %v222 = vsel %vm72, %v220, %v218
  %v223 = vmul.f32 %v222, %v75
  %v224 = vmul.f32 %v221, %v76
  %225 = vrot.lane.b32.xlu0 %v215, 9
  %v226 = vpop.permute.xlu0 %225
  %227 = vrot.lane.b32.xlu0 %v216, 9
  %v228 = vpop.permute.xlu0 %227
  %v229 = vsel %vm83, %v226, %v228
  %v230 = vsel %vm83, %v228, %v226
  %v231 = vmul.f32 %v230, %v86
  %v232 = vmul.f32 %v229, %v87
  %233 = vrot.lane.b32.xlu0 %v215, 8
  %v234 = vpop.permute.xlu0 %233
  %235 = vrot.lane.b32.xlu0 %v216, 8
  %v236 = vpop.permute.xlu0 %235
  %v237 = vsel %vm94, %v234, %v236
  %v238 = vsel %vm94, %v236, %v234
  %v239 = vmul.f32 %v238, %v97
  %v240 = vmul.f32 %v237, %v98
  %241 = vrot.lane.b32.xlu0 %v215, 1
  %v242 = vpop.permute.xlu0 %241
  %243 = vrot.lane.b32.xlu0 %v216, 1
  %v244 = vpop.permute.xlu0 %243
  %v245 = vsel %vm105, %v242, %v244
  %v246 = vsel %vm105, %v244, %v242
  %v247 = vmul.f32 %v246, %v108
  %v248 = vmul.f32 %v245, %v109
  %v249 = vmul.f32 %v215, %v112
  %v250 = vmul.f32 %v216, %v113
  %251 = vrot.lane.b32.xlu0 %v215, 127
  %v252 = vpop.permute.xlu0 %251
  %253 = vrot.lane.b32.xlu0 %v216, 127
  %v254 = vpop.permute.xlu0 %253
  %v255 = vsel %vm120, %v252, %v254
  %v256 = vsel %vm120, %v254, %v252
  %v257 = vmul.f32 %v255, %v123
  %v258 = vmul.f32 %v256, %v124
  %259 = vrot.lane.b32.xlu0 %v215, 120
  %v260 = vpop.permute.xlu0 %259
  %261 = vrot.lane.b32.xlu0 %v216, 120
  %v262 = vpop.permute.xlu0 %261
  %v263 = vsel %vm131, %v260, %v262
  %v264 = vsel %vm131, %v262, %v260
  %v265 = vmul.f32 %v263, %v134
  %v266 = vmul.f32 %v264, %v135
  %267 = vrot.lane.b32.xlu0 %v215, 119
  %v268 = vpop.permute.xlu0 %267
  %269 = vrot.lane.b32.xlu0 %v216, 119
  %v270 = vpop.permute.xlu0 %269
  %v271 = vsel %vm142, %v268, %v270
  %v272 = vsel %vm142, %v270, %v268
  %v273 = vmul.f32 %v271, %v145
  %v274 = vmul.f32 %v272, %v146
  %275 = vrot.lane.b32.xlu0 %v215, 118
  %v276 = vpop.permute.xlu0 %275
  %277 = vrot.lane.b32.xlu0 %v216, 118
  %v278 = vpop.permute.xlu0 %277
  %v279 = vsel %vm153, %v276, %v278
  %v280 = vsel %vm153, %v278, %v276
  %v281 = vmul.f32 %v279, %v156
  %v282 = vmul.f32 %v280, %v157
  %v283 = vld [vmem:[%s4] sm:$0xff]
  %v284 = vld [vmem:[%s5] sm:$0xff]
  %286 = vset.pattern.permute.xlu0 0
  %287 = vperm.xlu0 %286, %v284
  %v288 = vpop.permute.xlu0 %287
  %v291 = vsel %vm167, %v283, 0
  %293 = vmatpush.msra.mxu0 0.0
  %294 = vmatpush.msra.mxu0 0.0
  %295 = vmatpush.msra.mxu0 0.0
  %296 = vmatpush.msra.mxu0 0.0
  %297 = vmatpush.msra.mxu0 0.0
  %298 = vmatpush.msra.mxu0 0.0
  %299 = vmatpush.msra.mxu0 0.0
  %300 = vmatpush.msra.mxu0 %v281
  %301 = vmatpush.msra.mxu0 %v273
  %302 = vmatpush.msra.mxu0 %v265
  %303 = vmatpush.msra.mxu0 %v257
  %304 = vmatpush.msra.mxu0 %v249
  %305 = vmatpush.msra.mxu0 %v247
  %306 = vmatpush.msra.mxu0 %v239
  %307 = vmatpush.msra.mxu0 %v231
  %308 = vmatpush.msra.mxu0 %v223
  %309 = vmatmul.f32.gmra.mxu0 %v291
  %v310 = vpop.f32.mrf.mxu0
  %v311 = vadd.f32 %v288, %v310
  %312 = vdwg.mxu0
  %313 = vmatpush.msra.mxu0 0.0
  %314 = vmatpush.msra.mxu0 0.0
  %315 = vmatpush.msra.mxu0 0.0
  %316 = vmatpush.msra.mxu0 0.0
  %317 = vmatpush.msra.mxu0 0.0
  %318 = vmatpush.msra.mxu0 0.0
  %319 = vmatpush.msra.mxu0 0.0
  %320 = vmatpush.msra.mxu0 %v282
  %321 = vmatpush.msra.mxu0 %v274
  %322 = vmatpush.msra.mxu0 %v266
  %323 = vmatpush.msra.mxu0 %v258
  %324 = vmatpush.msra.mxu0 %v250
  %325 = vmatpush.msra.mxu0 %v248
  %326 = vmatpush.msra.mxu0 %v240
  %327 = vmatpush.msra.mxu0 %v232
  %328 = vmatpush.msra.mxu0 %v224
  %329 = vmatmul.f32.gmra.mxu0 %v291
  %v330 = vpop.f32.mrf.mxu0
  %v331 = vadd.f32 %v288, %v330
  %332 = vdwg.mxu0
  %v333 = vmax.f32 %v53, 1e-12
  %v334 = vmax.f32 %v65, 1e-12
  %v335 = vrcp.pop %v333
  %v336 = vmul.f32 %v333, %v335
  %v337 = vsub.f32 1.0, %v336
  %v338 = vmul.f32 %v335, %v337
  %v339 = vadd.f32 %v335, %v338
  %vm340 = vweird.f32 %v333
  %vm341 = vweird.f32 %v335
  %vm342 = vmor %vm340, %vm341
  %v343 = vsel %vm342, %v335, %v339
  %v344 = vand.u32 2147483647, %v333
  %vm345 = vcmp.eq.f32.partialorder %v344, 8.507059e+37
  %v346 = vand.u32 %v333, 2147483648
  %v347 = vor.u32 1.1754944e-38, %v346
  %v348 = vsel %vm345, %v347, %v343
  %v349 = vrcp.pop %v334
  %v350 = vmul.f32 %v334, %v349
  %v351 = vsub.f32 1.0, %v350
  %v352 = vmul.f32 %v349, %v351
  %v353 = vadd.f32 %v349, %v352
  %vm354 = vweird.f32 %v334
  %vm355 = vweird.f32 %v349
  %vm356 = vmor %vm354, %vm355
  %v357 = vsel %vm356, %v349, %v353
  %v358 = vand.u32 2147483647, %v334
  %vm359 = vcmp.eq.f32.partialorder %v358, 8.507059e+37
  %v360 = vand.u32 %v334, 2147483648
  %v361 = vor.u32 1.1754944e-38, %v360
  %v362 = vsel %vm359, %v361, %v357
  %v363 = vmul.f32 %v311, %v348
  %v364 = vmul.f32 %v331, %v362
  %v365 = vmul.f32 %v28, %v363
  %v366 = vmul.f32 %v29, %v364
  %367 = vst [vmem:[%s7] sm:$0xff] %v365
  %368 = vst [vmem:[%s7 + $0x8] sm:$0xff] %v366
  %v369 = vmul.f32 %v30, %v363
  %v370 = vmul.f32 %v31, %v364
  %371 = vst [vmem:[%s8] sm:$0xff] %v369
  %372 = vst [vmem:[%s8 + $0x8] sm:$0xff] %v370
  // Predicated region
  $region30: #{mffe_forward.2} parent=0 // pred_check
    _
  $region31: #{mffe_forward.2} parent=0 // pred_check_branch
    %374 = sbr.rel (0) target = $region33
  $region32: #{mffe_forward.2} parent=0 // pred_region
    _
  $region33: #{mffe_forward.2} parent=0 // pred_fallthru
    _
  // Predicated region
  $region34: #{mffe_forward.2} parent=0 // pred_check
    _
  $region35: #{mffe_forward.2} parent=0 // pred_check_branch
    %376 = sbr.rel (0) target = $region37
  $region36: #{mffe_forward.2} parent=0 // pred_region
    _
  $region37: #{mffe_forward.2} parent=0 // pred_fallthru
    _
  // Predicated region
  $region38: #{mffe_forward.2} parent=0 // pred_check
    _
  $region39: #{mffe_forward.2} parent=0 // pred_check_branch
    %378 = sbr.rel (0) target = $region41
  $region40: #{mffe_forward.2} parent=0 // pred_region
    _
  $region41: #{mffe_forward.2} parent=0 // pred_fallthru
    _
  // Predicated region
  $region42: #{mffe_forward.2} parent=0 // pred_check
    _
  $region43: #{mffe_forward.2} parent=0 // pred_check_branch
    %380 = sbr.rel (0) target = $region45
  $region44: #{mffe_forward.2} parent=0 // pred_region
    _
  $region45: #{mffe_forward.2} parent=0 // pred_fallthru
    _

// kernel: mffe_forward.3
$region0: #{mffe_forward.3}
  #allocation0 [shape = 'u32[]', space=smem, size = 0x4, offset = 0x4, fixed_abs, tag = 'smem constant byte address 0x4 - core index']
  #allocation1 [shape = 'u32[72,128]{1,0:T(1,128)}', space=vmem, size = 0x9000, scoped, tag = 'internal scratch']
  %s0 = inlined_call_operand.vmem [shape: f32[1,8,256], index: 0, kind: input, shape index: {}]
  %s1 = inlined_call_operand.vmem [shape: f32[1,8,256], index: 1, kind: input, shape index: {}]
  %s2 = inlined_call_operand.vmem [shape: f32[8,72], index: 2, kind: input, shape index: {}]
  %s3 = inlined_call_operand.vmem [shape: f32[8,1], index: 3, kind: input, shape index: {}]
  %s4 = inlined_call_operand.vmem [shape: f32[8,72], index: 4, kind: input, shape index: {}]
  %s5 = inlined_call_operand.vmem [shape: f32[8,1], index: 5, kind: input, shape index: {}]
  %s6 = inlined_call_operand.vmem [shape: f32[8,8], index: 6, kind: input, shape index: {}]
  %s7 = inlined_call_operand.vmem [shape: f32[8,8], index: 7, kind: input, shape index: {}]
  %s8 = inlined_call_operand.vmem [shape: f32[8,1], index: 8, kind: input, shape index: {}]
  %s9 = inlined_call_operand.vmem [shape: f32[9,256], index: 9, kind: input, shape index: {}]
  %s10 = inlined_call_operand.vmem [shape: f32[1,8,256], index: 10, kind: output, shape index: {}]
  %s11 = sld [smem:[#allocation0]]
  $region50: #{mffe_forward.3} parent=0
    _
  %s13 = ssub.s32 1, %s11
  %s14 = scalar_select 0, %s13, %s11
  // Predicated region
  $region2: #{mffe_forward.3} parent=0 // pred_check
    _
  $region3: #{mffe_forward.3} parent=0 // pred_check_branch
    %16 = sbr.rel (0) target = $region5
  $region4: #{mffe_forward.3} parent=0 // pred_region
    _
  $region5: #{mffe_forward.3} parent=0 // pred_fallthru
    _
  // Predicated region
  $region6: #{mffe_forward.3} parent=0 // pred_check
    _
  $region7: #{mffe_forward.3} parent=0 // pred_check_branch
    %18 = sbr.rel (0) target = $region9
  $region8: #{mffe_forward.3} parent=0 // pred_region
    _
  $region9: #{mffe_forward.3} parent=0 // pred_fallthru
    _
  // Predicated region
  $region10: #{mffe_forward.3} parent=0 // pred_check
    _
  $region11: #{mffe_forward.3} parent=0 // pred_check_branch
    %20 = sbr.rel (0) target = $region13
  $region12: #{mffe_forward.3} parent=0 // pred_region
    _
  $region13: #{mffe_forward.3} parent=0 // pred_fallthru
    _
  // Predicated region
  $region14: #{mffe_forward.3} parent=0 // pred_check
    _
  $region15: #{mffe_forward.3} parent=0 // pred_check_branch
    %22 = sbr.rel (0) target = $region17
  $region16: #{mffe_forward.3} parent=0 // pred_region
    _
  $region17: #{mffe_forward.3} parent=0 // pred_fallthru
    _
  // Predicated region
  $region18: #{mffe_forward.3} parent=0 // pred_check
    _
  $region19: #{mffe_forward.3} parent=0 // pred_check_branch
    %24 = sbr.rel (0) target = $region21
  $region20: #{mffe_forward.3} parent=0 // pred_region
    _
  $region21: #{mffe_forward.3} parent=0 // pred_fallthru
    _
  // Predicated region
  $region22: #{mffe_forward.3} parent=0 // pred_check
    _
  $region23: #{mffe_forward.3} parent=0 // pred_check_branch
    %26 = sbr.rel (0) target = $region25
  $region24: #{mffe_forward.3} parent=0 // pred_region
    _
  $region25: #{mffe_forward.3} parent=0 // pred_fallthru
    _
  // Predicated region
  $region26: #{mffe_forward.3} parent=0 // pred_check
    _
  $region27: #{mffe_forward.3} parent=0 // pred_check_branch
    %28 = sbr.rel (0) target = $region29
  $region28: #{mffe_forward.3} parent=0 // pred_region
    _
  $region29: #{mffe_forward.3} parent=0 // pred_fallthru
    _
  // Predicated region
  $region30: #{mffe_forward.3} parent=0 // pred_check
    _
  $region31: #{mffe_forward.3} parent=0 // pred_check_branch
    %30 = sbr.rel (0) target = $region33
  $region32: #{mffe_forward.3} parent=0 // pred_region
    _
  $region33: #{mffe_forward.3} parent=0 // pred_fallthru
    _
  // Predicated region
  $region34: #{mffe_forward.3} parent=0 // pred_check
    _
  $region35: #{mffe_forward.3} parent=0 // pred_check_branch
    %32 = sbr.rel (0) target = $region37
  $region36: #{mffe_forward.3} parent=0 // pred_region
    _
  $region37: #{mffe_forward.3} parent=0 // pred_fallthru
    _
  // Predicated region
  $region38: #{mffe_forward.3} parent=0 // pred_check
    _
  $region39: #{mffe_forward.3} parent=0 // pred_check_branch
    %34 = sbr.rel (0) target = $region41
  $region40: #{mffe_forward.3} parent=0 // pred_region
    _
  $region41: #{mffe_forward.3} parent=0 // pred_fallthru
    _
  %v35 = vld [vmem:[%s0] sm:$0xff]
  %v36 = vld [vmem:[%s0 + $0x8] sm:$0xff]
  %v37 = vld [vmem:[%s1] sm:$0xff]
  %v38 = vld [vmem:[%s1 + $0x8] sm:$0xff]
  %v39 = vld [vmem:[%s9] sm:$0xff]
  %v40 = vld [vmem:[%s9 + $0x8] sm:$0xff]
  %v41 = vld [vmem:[%s9 + $0x10] sm:$0x1]
  %v42 = vld [vmem:[%s9 + $0x18] sm:$0x1]
  %43 = vrot.lane.b32.xlu0 %v35, 17
  %v44 = vpop.permute.xlu0 %43
  %45 = vrot.lane.b32.xlu0 %v36, 17
  %v46 = vpop.permute.xlu0 %45
  %v47 = vlaneseq
  %v48 = vand.u32 %v47, 127
  %vm49 = vcmp.lt.s32.totalorder %v48, 17
  %v50 = vsel %vm49, %v44, %v46
  %v51 = vsel %vm49, %v46, %v44
  %v52 = vperm.slane %v39, 0
  %v53 = vperm.slane %v40, 0
  %v54 = vmul.f32 %v51, %v52
  %v55 = vmul.f32 %v50, %v53
  %56 = vrot.lane.b32.xlu0 %v35, 16
  %v57 = vpop.permute.xlu0 %56
  %58 = vrot.lane.b32.xlu0 %v36, 16
  %v59 = vpop.permute.xlu0 %58
  %vm60 = vcmp.lt.s32.totalorder %v48, 16
  %v61 = vsel %vm60, %v57, %v59
  %v62 = vsel %vm60, %v59, %v57
  %v63 = vperm.slane %v39, 1
  %v64 = vperm.slane %v40, 1
  %v65 = vmul.f32 %v62, %v63
  %v66 = vmul.f32 %v61, %v64
  %67 = vrot.lane.b32.xlu0 %v35, 15
  %v68 = vpop.permute.xlu0 %67
  %69 = vrot.lane.b32.xlu0 %v36, 15
  %v70 = vpop.permute.xlu0 %69
  %vm71 = vcmp.lt.s32.totalorder %v48, 15
  %v72 = vsel %vm71, %v68, %v70
  %v73 = vsel %vm71, %v70, %v68
  %v74 = vperm.slane %v39, 2
  %v75 = vperm.slane %v40, 2
  %v76 = vmul.f32 %v73, %v74
  %v77 = vmul.f32 %v72, %v75
  %78 = vrot.lane.b32.xlu0 %v35, 1
  %v79 = vpop.permute.xlu0 %78
  %80 = vrot.lane.b32.xlu0 %v36, 1
  %v81 = vpop.permute.xlu0 %80
  %vm82 = vcmp.lt.s32.totalorder %v48, 1
  %v83 = vsel %vm82, %v79, %v81
  %v84 = vsel %vm82, %v81, %v79
  %v85 = vperm.slane %v39, 3
  %v86 = vperm.slane %v40, 3
  %v87 = vmul.f32 %v84, %v85
  %v88 = vmul.f32 %v83, %v86
  %v89 = vperm.slane %v39, 4
  %v90 = vperm.slane %v40, 4
  %v91 = vmul.f32 %v35, %v89
  %v92 = vmul.f32 %v36, %v90
  %93 = vrot.lane.b32.xlu0 %v35, 127
  %v94 = vpop.permute.xlu0 %93
  %95 = vrot.lane.b32.xlu0 %v36, 127
  %v96 = vpop.permute.xlu0 %95
  %vm97 = vcmp.lt.s32.totalorder %v48, 127
  %v98 = vsel %vm97, %v94, %v96
  %v99 = vsel %vm97, %v96, %v94
  %v100 = vperm.slane %v39, 5
  %v101 = vperm.slane %v40, 5
  %v102 = vmul.f32 %v98, %v100
  %v103 = vmul.f32 %v99, %v101
  %104 = vrot.lane.b32.xlu0 %v35, 113
  %v105 = vpop.permute.xlu0 %104
  %106 = vrot.lane.b32.xlu0 %v36, 113
  %v107 = vpop.permute.xlu0 %106
  %vm108 = vcmp.lt.s32.totalorder %v48, 113
  %v109 = vsel %vm108, %v105, %v107
  %v110 = vsel %vm108, %v107, %v105
  %v111 = vperm.slane %v39, 6
  %v112 = vperm.slane %v40, 6
  %v113 = vmul.f32 %v109, %v111
  %v114 = vmul.f32 %v110, %v112
  %115 = vrot.lane.b32.xlu0 %v35, 112
  %v116 = vpop.permute.xlu0 %115
  %117 = vrot.lane.b32.xlu0 %v36, 112
  %v118 = vpop.permute.xlu0 %117
  %vm119 = vcmp.lt.s32.totalorder %v48, 112
  %v120 = vsel %vm119, %v116, %v118
  %v121 = vsel %vm119, %v118, %v116
  %v122 = vperm.slane %v39, 7
  %v123 = vperm.slane %v40, 7
  %v124 = vmul.f32 %v120, %v122
  %v125 = vmul.f32 %v121, %v123
  %126 = vrot.lane.b32.xlu0 %v35, 111
  %v127 = vpop.permute.xlu0 %126
  %128 = vrot.lane.b32.xlu0 %v36, 111
  %v129 = vpop.permute.xlu0 %128
  %vm130 = vcmp.lt.s32.totalorder %v48, 111
  %v131 = vsel %vm130, %v127, %v129
  %v132 = vsel %vm130, %v129, %v127
  %v133 = vperm.slane %v41, 0
  %v134 = vperm.slane %v42, 0
  %v135 = vmul.f32 %v131, %v133
  %v136 = vmul.f32 %v132, %v134
  %v137 = vld [vmem:[%s2] sm:$0xff]
  %v138 = vld [vmem:[%s3] sm:$0xff]
  %140 = vset.pattern.permute.xlu0 0
  %141 = vperm.xlu0 %140, %v138
  %v142 = vpop.permute.xlu0 %141
  %vm144 = vcmask 588800
  %v146 = vsel %vm144, %v137, 0
  %148 = vmatpush.msra.mxu0 0.0
  %149 = vmatpush.msra.mxu0 0.0
  %150 = vmatpush.msra.mxu0 0.0
  %151 = vmatpush.msra.mxu0 0.0
  %152 = vmatpush.msra.mxu0 0.0
  %153 = vmatpush.msra.mxu0 0.0
  %154 = vmatpush.msra.mxu0 0.0
  %155 = vmatpush.msra.mxu0 %v135
  %156 = vmatpush.msra.mxu0 %v124
  %157 = vmatpush.msra.mxu0 %v113
  %158 = vmatpush.msra.mxu0 %v102
  %159 = vmatpush.msra.mxu0 %v91
  %160 = vmatpush.msra.mxu0 %v87
  %161 = vmatpush.msra.mxu0 %v76
  %162 = vmatpush.msra.mxu0 %v65
  %163 = vmatpush.msra.mxu0 %v54
  %164 = vmatmul.f32.gmra.mxu0 %v146
  %v165 = vpop.f32.mrf.mxu0
  %v166 = vadd.f32 %v142, %v165
  %167 = vdwg.mxu0
  %168 = vmatpush.msra.mxu0 0.0
  %169 = vmatpush.msra.mxu0 0.0
  %170 = vmatpush.msra.mxu0 0.0
  %171 = vmatpush.msra.mxu0 0.0
  %172 = vmatpush.msra.mxu0 0.0
  %173 = vmatpush.msra.mxu0 0.0
  %174 = vmatpush.msra.mxu0 0.0
  %175 = vmatpush.msra.mxu0 %v136
  %176 = vmatpush.msra.mxu0 %v125
  %177 = vmatpush.msra.mxu0 %v114
  %178 = vmatpush.msra.mxu0 %v103
  %179 = vmatpush.msra.mxu0 %v92
  %180 = vmatpush.msra.mxu0 %v88
  %181 = vmatpush.msra.mxu0 %v77
  %182 = vmatpush.msra.mxu0 %v66
  %183 = vmatpush.msra.mxu0 %v55
  %184 = vmatmul.f32.gmra.mxu0 %v146
  %v185 = vpop.f32.mrf.mxu0
  %v186 = vadd.f32 %v142, %v185
  %187 = vdwg.mxu0
  %vm188 = vcmp.ge.f32.partialorder %v166, 0.0
  %vm189 = vcmp.ge.f32.partialorder %v186, 0.0
  %v190 = vmul.f32 %v166, 0.2
  %v191 = vmul.f32 %v186, 0.2
  %v192 = vsel %vm188, %v166, %v190
  %v193 = vsel %vm189, %v186, %v191
  %194 = vrot.lane.b32.xlu0 %v192, 17
  %v195 = vpop.permute.xlu0 %194
  %196 = vrot.lane.b32.xlu0 %v193, 17
  %v197 = vpop.permute.xlu0 %196
  %v198 = vsel %vm49, %v195, %v197
  %v199 = vsel %vm49, %v197, %v195
  %v200 = vmul.f32 %v199, %v52
  %v201 = vmul.f32 %v198, %v53
  %202 = vrot.lane.b32.xlu0 %v192, 16
  %v203 = vpop.permute.xlu0 %202
  %204 = vrot.lane.b32.xlu0 %v193, 16
  %v205 = vpop.permute.xlu0 %204
  %v206 = vsel %vm60, %v203, %v205
  %v207 = vsel %vm60, %v205, %v203
  %v208 = vmul.f32 %v207, %v63
  %v209 = vmul.f32 %v206, %v64
  %210 = vrot.lane.b32.xlu0 %v192, 15
  %v211 = vpop.permute.xlu0 %210
  %212 = vrot.lane.b32.xlu0 %v193, 15
  %v213 = vpop.permute.xlu0 %212
  %v214 = vsel %vm71, %v211, %v213
  %v215 = vsel %vm71, %v213, %v211
  %v216 = vmul.f32 %v215, %v74
  %v217 = vmul.f32 %v214, %v75
  %218 = vrot.lane.b32.xlu0 %v192, 1
  %v219 = vpop.permute.xlu0 %218
  %220 = vrot.lane.b32.xlu0 %v193, 1
  %v221 = vpop.permute.xlu0 %220
  %v222 = vsel %vm82, %v219, %v221
  %v223 = vsel %vm82, %v221, %v219
  %v224 = vmul.f32 %v223, %v85
  %v225 = vmul.f32 %v222, %v86
  %v226 = vmul.f32 %v192, %v89
  %v227 = vmul.f32 %v193, %v90
  %228 = vrot.lane.b32.xlu0 %v192, 127
  %v229 = vpop.permute.xlu0 %228
  %230 = vrot.lane.b32.xlu0 %v193, 127
  %v231 = vpop.permute.xlu0 %230
  %v232 = vsel %vm97, %v229, %v231
  %v233 = vsel %vm97, %v231, %v229
  %v234 = vmul.f32 %v232, %v100
  %v235 = vmul.f32 %v233, %v101
  %236 = vrot.lane.b32.xlu0 %v192, 113
  %v237 = vpop.permute.xlu0 %236
  %238 = vrot.lane.b32.xlu0 %v193, 113
  %v239 = vpop.permute.xlu0 %238
  %v240 = vsel %vm108, %v237, %v239
  %v241 = vsel %vm108, %v239, %v237
  %v242 = vmul.f32 %v240, %v111
  %v243 = vmul.f32 %v241, %v112
  %244 = vrot.lane.b32.xlu0 %v192, 112
  %v245 = vpop.permute.xlu0 %244
  %246 = vrot.lane.b32.xlu0 %v193, 112
  %v247 = vpop.permute.xlu0 %246
  %v248 = vsel %vm119, %v245, %v247
  %v249 = vsel %vm119, %v247, %v245
  %v250 = vmul.f32 %v248, %v122
  %v251 = vmul.f32 %v249, %v123
  %252 = vrot.lane.b32.xlu0 %v192, 111
  %v253 = vpop.permute.xlu0 %252
  %254 = vrot.lane.b32.xlu0 %v193, 111
  %v255 = vpop.permute.xlu0 %254
  %v256 = vsel %vm130, %v253, %v255
  %v257 = vsel %vm130, %v255, %v253
  %v258 = vmul.f32 %v256, %v133
  %v259 = vmul.f32 %v257, %v134
  %v260 = vld [vmem:[%s4] sm:$0xff]
  %v261 = vld [vmem:[%s5] sm:$0xff]
  %263 = vset.pattern.permute.xlu0 0
  %264 = vperm.xlu0 %263, %v261
  %v265 = vpop.permute.xlu0 %264
  %v268 = vsel %vm144, %v260, 0
  %270 = vmatpush.msra.mxu0 0.0
  %271 = vmatpush.msra.mxu0 0.0
  %272 = vmatpush.msra.mxu0 0.0
  %273 = vmatpush.msra.mxu0 0.0
  %274 = vmatpush.msra.mxu0 0.0
  %275 = vmatpush.msra.mxu0 0.0
  %276 = vmatpush.msra.mxu0 0.0
  %277 = vmatpush.msra.mxu0 %v258
  %278 = vmatpush.msra.mxu0 %v250
  %279 = vmatpush.msra.mxu0 %v242
  %280 = vmatpush.msra.mxu0 %v234
  %281 = vmatpush.msra.mxu0 %v226
  %282 = vmatpush.msra.mxu0 %v224
  %283 = vmatpush.msra.mxu0 %v216
  %284 = vmatpush.msra.mxu0 %v208
  %285 = vmatpush.msra.mxu0 %v200
  %286 = vmatmul.f32.gmra.mxu0 %v268
  %v287 = vpop.f32.mrf.mxu0
  %v288 = vadd.f32 %v265, %v287
  %289 = vdwg.mxu0
  %290 = vmatpush.msra.mxu0 0.0
  %291 = vmatpush.msra.mxu0 0.0
  %292 = vmatpush.msra.mxu0 0.0
  %293 = vmatpush.msra.mxu0 0.0
  %294 = vmatpush.msra.mxu0 0.0
  %295 = vmatpush.msra.mxu0 0.0
  %296 = vmatpush.msra.mxu0 0.0
  %297 = vmatpush.msra.mxu0 %v259
  %298 = vmatpush.msra.mxu0 %v251
  %299 = vmatpush.msra.mxu0 %v243
  %300 = vmatpush.msra.mxu0 %v235
  %301 = vmatpush.msra.mxu0 %v227
  %302 = vmatpush.msra.mxu0 %v225
  %303 = vmatpush.msra.mxu0 %v217
  %304 = vmatpush.msra.mxu0 %v209
  %305 = vmatpush.msra.mxu0 %v201
  %306 = vmatmul.f32.gmra.mxu0 %v268
  %v307 = vpop.f32.mrf.mxu0
  %v308 = vadd.f32 %v265, %v307
  %309 = vdwg.mxu0
  %v310 = vadd.f32 %v288, %v35
  %v311 = vadd.f32 %v308, %v36
  %v312 = vld [vmem:[%s6] sm:$0xff]
  %v313 = vld [vmem:[%s7] sm:$0xff]
  %vm314 = vcmask 64512
  %v316 = vsel %vm314, %v313, 0
  %318 = vmatpush.msra.mxu0 0.0
  %319 = vmatpush.msra.mxu0 0.0
  %320 = vmatpush.msra.mxu0 0.0
  %321 = vmatpush.msra.mxu0 0.0
  %322 = vmatpush.msra.mxu0 0.0
  %323 = vmatpush.msra.mxu0 0.0
  %324 = vmatpush.msra.mxu0 0.0
  %325 = vmatpush.msra.mxu0 0.0
  %326 = vmatpush.msra.mxu0 0.0
  %327 = vmatpush.msra.mxu0 0.0
  %328 = vmatpush.msra.mxu0 0.0
  %329 = vmatpush.msra.mxu0 0.0
  %330 = vmatpush.msra.mxu0 0.0
  %331 = vmatpush.msra.mxu0 0.0
  %332 = vmatpush.msra.mxu0 0.0
  %333 = vmatpush.msra.mxu0 %v37
  %334 = vmatmul.f32.gmra.mxu0 %v316
  %v335 = vpop.f32.mrf.mxu0
  %v336 = vadd.f32 0.0, %v335
  %337 = vdwg.mxu0
  %338 = vmatpush.msra.mxu0 0.0
  %339 = vmatpush.msra.mxu0 0.0
  %340 = vmatpush.msra.mxu0 0.0
  %341 = vmatpush.msra.mxu0 0.0
  %342 = vmatpush.msra.mxu0 0.0
  %343 = vmatpush.msra.mxu0 0.0
  %344 = vmatpush.msra.mxu0 0.0
  %345 = vmatpush.msra.mxu0 0.0
  %346 = vmatpush.msra.mxu0 0.0
  %347 = vmatpush.msra.mxu0 0.0
  %348 = vmatpush.msra.mxu0 0.0
  %349 = vmatpush.msra.mxu0 0.0
  %350 = vmatpush.msra.mxu0 0.0
  %351 = vmatpush.msra.mxu0 0.0
  %352 = vmatpush.msra.mxu0 0.0
  %353 = vmatpush.msra.mxu0 %v38
  %354 = vmatmul.f32.gmra.mxu0 %v316
  %v355 = vpop.f32.mrf.mxu0
  %v356 = vadd.f32 0.0, %v355
  %357 = vdwg.mxu0
  %v359 = vsel %vm314, %v312, 0
  %361 = vmatpush.msra.mxu0 0.0
  %362 = vmatpush.msra.mxu0 0.0
  %363 = vmatpush.msra.mxu0 0.0
  %364 = vmatpush.msra.mxu0 0.0
  %365 = vmatpush.msra.mxu0 0.0
  %366 = vmatpush.msra.mxu0 0.0
  %367 = vmatpush.msra.mxu0 0.0
  %368 = vmatpush.msra.mxu0 0.0
  %369 = vmatpush.msra.mxu0 0.0
  %370 = vmatpush.msra.mxu0 0.0
  %371 = vmatpush.msra.mxu0 0.0
  %372 = vmatpush.msra.mxu0 0.0
  %373 = vmatpush.msra.mxu0 0.0
  %374 = vmatpush.msra.mxu0 0.0
  %375 = vmatpush.msra.mxu0 0.0
  %376 = vmatpush.msra.mxu0 %v310
  %377 = vmatmul.f32.gmra.mxu0 %v359
  %v378 = vpop.f32.mrf.mxu0
  %v379 = vadd.f32 %v336, %v378
  %380 = vdwg.mxu0
  %381 = vmatpush.msra.mxu0 0.0
  %382 = vmatpush.msra.mxu0 0.0
  %383 = vmatpush.msra.mxu0 0.0
  %384 = vmatpush.msra.mxu0 0.0
  %385 = vmatpush.msra.mxu0 0.0
  %386 = vmatpush.msra.mxu0 0.0
  %387 = vmatpush.msra.mxu0 0.0
  %388 = vmatpush.msra.mxu0 0.0
  %389 = vmatpush.msra.mxu0 0.0
  %390 = vmatpush.msra.mxu0 0.0
  %391 = vmatpush.msra.mxu0 0.0
  %392 = vmatpush.msra.mxu0 0.0
  %393 = vmatpush.msra.mxu0 0.0
  %394 = vmatpush.msra.mxu0 0.0
  %395 = vmatpush.msra.mxu0 0.0
  %396 = vmatpush.msra.mxu0 %v311
  %397 = vmatmul.f32.gmra.mxu0 %v359
  %v398 = vpop.f32.mrf.mxu0
  %v399 = vadd.f32 %v356, %v398
  %400 = vdwg.mxu0
  %v401 = vld [vmem:[%s8] sm:$0xff]
  %403 = vset.pattern.permute.xlu0 0
  %404 = vperm.xlu0 %403, %v401
  %v405 = vpop.permute.xlu0 %404
  %v407 = vadd.f32 %v379, %v405
  %v408 = vadd.f32 %v399, %v405
  %409 = vst [vmem:[%s10] sm:$0xff] %v407
  %410 = vst [vmem:[%s10 + $0x8] sm:$0xff] %v408
  // Predicated region
  $region42: #{mffe_forward.3} parent=0 // pred_check
    _
  $region43: #{mffe_forward.3} parent=0 // pred_check_branch
    %412 = sbr.rel (0) target = $region45
  $region44: #{mffe_forward.3} parent=0 // pred_region
    _
  $region45: #{mffe_forward.3} parent=0 // pred_fallthru
    _
  // Predicated region
  $region46: #{mffe_forward.3} parent=0 // pred_check
    _
  $region47: #{mffe_forward.3} parent=0 // pred_check_branch
    %414 = sbr.rel (0) target = $region49
  $region48: #{mffe_forward.3} parent=0 // pred_region
    _
  $region49: #{mffe_forward.3} parent=0 // pred_fallthru
    _

</llo_original>
